<compile_context>
chip_gen: v5e
topology: v5e:2x2
jax: 0.10.0
libtpu: 0.0.40
codegen_flags: <defaults>
</compile_context>

<pallas_src>
import jax
import jax.numpy as jnp
from jax import lax
from jax.experimental import pallas as pl
from jax.experimental.pallas import tpu as pltpu

DT = 1.0
# nn.Module defaults to training mode -> coll_coef = 0.5 (eval mode would use 0.0)
COLL_COEF = 0.5


def _pick_i_tile(n: int) -> int:
    """Largest i-tile that divides n, keeps >=2 pipeline steps along i, and
    respects the bf16 (16,128) / f32 (8,128) sublane granules."""
    for cand in (128, 64, 32, 16):
        if cand < n and n % cand == 0:
            return cand
    return n


def dsmc_kernel(x_ref, v_ref, xt_ref, vt_ref, r_ref,
                xo_ref, vo_ref, dv_ref, vmax_ref):
    """One (batch b, i-tile t) grid step of the DSMC collision update.

    x_ref, v_ref  : (1, C, N)   position / drifted velocity (v + a*dt), f32
    xt_ref, vt_ref: (1, TI, C)  transposed i-tile slices of x / v, f32
    r_ref         : (1, C, TI, N) bf16 tile of the antisymmetric projection matrix
    xo_ref, vo_ref: (1, C, N)   outputs, written at the last i-tile
    dv_ref        : (C, N) f32 VMEM accumulator, resident across i-tiles
    vmax_ref      : (1, 1) f32 VMEM cache of max_ij ||v_i - v_j|| for this batch
    """
    t = pl.program_id(1)
    num_t = pl.num_programs(1)

    x = x_ref[0]                                    # (C, N)
    v = v_ref[0]                                    # (C, N)
    xs = xt_ref[0]                                  # (TI, C) tile rows, transposed
    vs = vt_ref[0]                                  # (TI, C)

    xn2 = jnp.sum(x * x, axis=0, keepdims=True)     # (1, N)  ||x_j||^2
    vn2 = jnp.sum(v * v, axis=0, keepdims=True)     # (1, N)  ||v_j||^2

    @pl.when(t == 0)
    def _init():
        dv_ref[...] = jnp.zeros_like(dv_ref)
        # Global max relative speed via one full (N,N) Gram on the MXU, once per batch.
        g = lax.dot_general(v, v, (((0,), (0,)), ((), ())),
                            preferred_element_type=jnp.float32)           # (N, N)
        d2 = jnp.maximum(vn2 + vn2.T - 2.0 * g, 0.0)
        vmax_ref[...] = jnp.sqrt(jnp.max(d2, axis=(0, 1), keepdims=True))

    thr = (1.0 - COLL_COEF) * vmax_ref[...]         # (1, 1), broadcast below

    # Pairwise distances of this i-tile against all particles (Gram / MXU form).
    xs_n2 = jnp.sum(xs * xs, axis=1, keepdims=True)                        # (TI, 1)
    vs_n2 = jnp.sum(vs * vs, axis=1, keepdims=True)                        # (TI, 1)
    gx = jnp.dot(xs, x, preferred_element_type=jnp.float32)                # (TI, N)
    gv = jnp.dot(vs, v, preferred_element_type=jnp.float32)                # (TI, N)
    x_r = jnp.sqrt(jnp.maximum(xs_n2 + xn2 - 2.0 * gx, 0.0))               # (TI, N)
    v_r = jnp.sqrt(jnp.maximum(vs_n2 + vn2 - 2.0 * gv, 0.0))               # (TI, N)

    u_x = jnp.exp(-x_r)
    # Divide-free form of (v_r / v_r_max) * u_x > 1 - coll_coef.
    coll = (v_r * u_x > thr).astype(jnp.float32)                           # (TI, N)
    w = v_r * coll                                                         # (TI, N)

    # dv[c,j] contribution of this tile's rows i:
    #   sum_i coll[i,j] * (0.5*(v[c,j] - v[c,i]) + v_r[i,j]*R[c,i,j])
    # = 0.5*v[c,j]*colsum(coll)[j] - 0.5*(v_tile @ coll)[c,j] + sum_i R[c,i,j]*w[i,j]
    col_cnt = jnp.sum(coll, axis=0, keepdims=True)                         # (1, N)
    v_coll = lax.dot_general(vs, coll, (((0,), (0,)), ((), ())),
                             preferred_element_type=jnp.float32)           # (C, N)
    r_tile = r_ref[0].astype(jnp.float32)                                  # (C, TI, N)
    r_term = jnp.sum(r_tile * w[None, :, :], axis=1)                       # (C, N)
    dv_ref[...] += 0.5 * (v * col_cnt - v_coll) + r_term

    @pl.when(t == num_t - 1)
    def _finalize():
        v_new = v + dv_ref[...]
        vo_ref[0] = v_new
        xo_ref[0] = x + v_new * DT


@jax.jit
def kinet_dsmc(x, v, a, rand_vec):
    """x, v, a: (B, C_old, H, W); rand_vec: (B_r>=B, C, N*(N-1)/2).
    Returns (x_new, v_new) with the same shape as x."""
    bs, c_old, h, w = x.shape
    chnl = rand_vec.shape[1]
    n_divide = chnl // c_old
    n = (h * w) // n_divide

    xf = x.reshape(bs, chnl, n).astype(jnp.float32)
    # v = v + a*dt applied up front (one fused XLA add) so the kernel streams one
    # fewer (B,C,N) array.
    vf = (v.reshape(bs, chnl, n).astype(jnp.float32)
          + a.reshape(bs, chnl, n).astype(jnp.float32) * DT)
    # Transposed copies so the i-tile BlockSpec slices sublanes (legal block shape)
    # and feeds the MXU without in-kernel transposes.
    xt = jnp.swapaxes(xf, 1, 2)                     # (B, N, C)
    vt = jnp.swapaxes(vf, 1, 2)                     # (B, N, C)

    # Antisymmetric projection matrix from the upper-triangle rand_vec:
    # one scatter + antisymmetrize, streamed to the kernel in bf16 (dominant HBM term).
    iu, ju = jnp.triu_indices(n, k=1)
    rv = rand_vec[:bs].astype(jnp.bfloat16)
    r_up = jnp.zeros((bs, chnl, n, n), jnp.bfloat16).at[:, :, iu, ju].set(rv)
    r_mat = r_up - jnp.swapaxes(r_up, -1, -2)
    # TODO(synk): avoid materializing R in HBM at all (reconstruct the (C,TI,N) tile
    # from rand_vec inside the kernel); it is ~half of the remaining HBM traffic.

    ti = _pick_i_tile(n)
    n_tiles = n // ti

    vec_spec = pl.BlockSpec((1, chnl, n), lambda b, t: (b, 0, 0))
    tile_spec = pl.BlockSpec((1, ti, chnl), lambda b, t: (b, t, 0))
    r_spec = pl.BlockSpec((1, chnl, ti, n), lambda b, t: (b, 0, t, 0))

    # Rough per-step working set (double-buffered bf16 R tile dominates),
    # clamped to stay inside v7x's 64 MiB physical VMEM.
    est = (2 * chnl * ti * n * 2          # R tile, 2 pipeline buffers (bf16)
           + 10 * chnl * n * 4            # x/v blocks, outputs, dv scratch
           + 4 * ti * chnl * 4            # transposed tile blocks
           + 3 * chnl * ti * n * 4        # f32 upcast / product temporaries
           + 8 * ti * n * 4               # x_r, v_r, u_x, coll, w, ...
           + 2 * n * n * 4)               # t==0 full velocity Gram
    vmem_limit = int(min(48 * 1024 * 1024, max(32 * 1024 * 1024, 2 * est)))

    x_out, v_out = pl.pallas_call(
        dsmc_kernel,
        grid=(bs, n_tiles),
        in_specs=[vec_spec, vec_spec, tile_spec, tile_spec, r_spec],
        out_specs=[vec_spec, vec_spec],
        out_shape=[jax.ShapeDtypeStruct((bs, chnl, n), jnp.float32),
                   jax.ShapeDtypeStruct((bs, chnl, n), jnp.float32)],
        scratch_shapes=[pltpu.VMEM((chnl, n), jnp.float32),   # dv accumulator
                        pltpu.VMEM((1, 1), jnp.float32)],     # v_r_max cache
        input_output_aliases={0: 0, 1: 1},
        compiler_params=pltpu.CompilerParams(
            dimension_semantics=("parallel", "arbitrary"),
            vmem_limit_bytes=vmem_limit),
    )(xf, vf, xt, vt, r_mat)

    return (x_out.reshape(bs, c_old, h, w), v_out.reshape(bs, c_old, h, w))


if __name__ == "__main__":
    key = jax.random.PRNGKey(0)
    B, C_old, H, W = 2, 4, 16, 16
    chnl = 8                                   # rand_vec channel dim -> n_divide = 2
    n = (H * W) // (chnl // C_old)             # 128 particles per batch element
    n_pairs = n * (n - 1) // 2                 # 8128

    k1, k2, k3, k4 = jax.random.split(key, 4)
    x = jax.random.normal(k1, (B, C_old, H, W), jnp.float32)
    v = jax.random.normal(k2, (B, C_old, H, W), jnp.float32) * 0.1
    a = jax.random.normal(k3, (B, C_old, H, W), jnp.float32) * 0.01
    rand_vec = jax.random.normal(k4, (B, chnl, n_pairs), jnp.float32)
    # random unit vectors on the chnl-dimensional sphere (normalized over channels)
    rand_vec = rand_vec / jnp.linalg.norm(rand_vec, axis=1, keepdims=True)

    x_out, v_out = kinet_dsmc(x, v, a, rand_vec)
    jax.block_until_ready((x_out, v_out))
    assert x_out.shape == (B, C_old, H, W) and v_out.shape == (B, C_old, H, W)
    assert bool(jnp.all(jnp.isfinite(x_out))) and bool(jnp.all(jnp.isfinite(v_out)))
    print("KERNEL_OK")
</pallas_src>

<mosaic_0001>
module attributes {stable_mosaic.version = 11 : i64} {
  func.func @dsmc_kernel(%arg0: i32, %arg1: i32, %arg2: memref<1x8x128xf32, #tpu.memory_space<vmem>>, %arg3: memref<1x8x128xf32, #tpu.memory_space<vmem>>, %arg4: memref<1x64x8xf32, #tpu.memory_space<vmem>>, %arg5: memref<1x64x8xf32, #tpu.memory_space<vmem>>, %arg6: memref<1x8x64x128xbf16, #tpu.memory_space<vmem>>, %arg7: memref<1x8x128xf32, #tpu.memory_space<vmem>>, %arg8: memref<1x8x128xf32, #tpu.memory_space<vmem>>, %arg9: memref<8x128xf32, #tpu.memory_space<vmem>>, %arg10: memref<1x1xf32, #tpu.memory_space<vmem>>) attributes {dimension_semantics = [#tpu.dimension_semantics<parallel>, #tpu.dimension_semantics<arbitrary>], iteration_bounds = array<i64: 2, 2>, scalar_prefetch = 0 : i64, scratch_operands = 2 : i64, tpu.core_type = #tpu.core_type<tc>, window_params = [{transform_indices = @transform_0, window_bounds = array<i64: 1, 8, 128>}, {transform_indices = @transform_1, window_bounds = array<i64: 1, 8, 128>}, {transform_indices = @transform_2, window_bounds = array<i64: 1, 64, 8>}, {transform_indices = @transform_3, window_bounds = array<i64: 1, 64, 8>}, {transform_indices = @transform_4, window_bounds = array<i64: 1, 8, 64, 128>}, {transform_indices = @transform_5, window_bounds = array<i64: 1, 8, 128>}, {transform_indices = @transform_6, window_bounds = array<i64: 1, 8, 128>}]} {
    %c0 = arith.constant 0 : index
    %c0_0 = arith.constant 0 : index
    %c0_1 = arith.constant 0 : index
    %0 = vector.load %arg2[%c0, %c0_0, %c0_1] : memref<1x8x128xf32, #tpu.memory_space<vmem>>, vector<1x8x128xf32>
    %1 = vector.shape_cast %0 : vector<1x8x128xf32> to vector<8x128xf32>
    %c0_2 = arith.constant 0 : index
    %c0_3 = arith.constant 0 : index
    %c0_4 = arith.constant 0 : index
    %2 = vector.load %arg3[%c0_2, %c0_3, %c0_4] : memref<1x8x128xf32, #tpu.memory_space<vmem>>, vector<1x8x128xf32>
    %3 = vector.shape_cast %2 : vector<1x8x128xf32> to vector<8x128xf32>
    %c0_5 = arith.constant 0 : index
    %c0_6 = arith.constant 0 : index
    %c0_7 = arith.constant 0 : index
    %4 = vector.load %arg4[%c0_5, %c0_6, %c0_7] : memref<1x64x8xf32, #tpu.memory_space<vmem>>, vector<1x64x8xf32>
    %5 = vector.shape_cast %4 : vector<1x64x8xf32> to vector<64x8xf32>
    %c0_8 = arith.constant 0 : index
    %c0_9 = arith.constant 0 : index
    %c0_10 = arith.constant 0 : index
    %6 = vector.load %arg5[%c0_8, %c0_9, %c0_10] : memref<1x64x8xf32, #tpu.memory_space<vmem>>, vector<1x64x8xf32>
    %7 = vector.shape_cast %6 : vector<1x64x8xf32> to vector<64x8xf32>
    %8 = arith.mulf %1, %1 : vector<8x128xf32>
    %cst = arith.constant dense<0.000000e+00> : vector<128xf32>
    %9 = vector.multi_reduction <add>, %8, %cst [0] : vector<8x128xf32> to vector<128xf32>
    %10 = vector.shape_cast %9 : vector<128xf32> to vector<1x128xf32>
    %11 = arith.mulf %3, %3 : vector<8x128xf32>
    %cst_11 = arith.constant dense<0.000000e+00> : vector<128xf32>
    %12 = vector.multi_reduction <add>, %11, %cst_11 [0] : vector<8x128xf32> to vector<128xf32>
    %13 = vector.shape_cast %12 : vector<128xf32> to vector<1x128xf32>
    %c0_i32 = arith.constant 0 : i32
    %14 = arith.cmpi eq, %arg1, %c0_i32 : i32
    %15 = arith.extui %14 : i1 to i32
    %c0_i32_12 = arith.constant 0 : i32
    %16 = arith.cmpi ne, %15, %c0_i32_12 : i32
    scf.if %16 {
      %cst_38 = arith.constant 0.000000e+00 : f32
      %77 = vector.broadcast %cst_38 : f32 to vector<8x128xf32>
      %c0_39 = arith.constant 0 : index
      %c0_40 = arith.constant 0 : index
      %78 = vector.load %arg9[%c0_39, %c0_40] : memref<8x128xf32, #tpu.memory_space<vmem>>, vector<8x128xf32>
      tpu.vector_store %arg9[%c0_39, %c0_40], %77 {strides = array<i32>} : memref<8x128xf32, #tpu.memory_space<vmem>>, vector<8x128xf32>,
      %cst_41 = arith.constant dense<0.000000e+00> : vector<128x128xf32>
      %79 = tpu.matmul %3, %3, %cst_41 {dimension_numbers = #tpu.dot_dimension_numbers<[0], [0], [1], [1], [0, 1, 1, 1], [], []>} : vector<8x128xf32>, vector<8x128xf32>, vector<128x128xf32> -> vector<128x128xf32>
      %80 = tpu.transpose %13, [1, 0] : vector<1x128xf32> -> vector<128x1xf32>
      %81 = vector.broadcast %13 : vector<1x128xf32> to vector<128x128xf32>
      %82 = vector.broadcast %80 : vector<128x1xf32> to vector<128x128xf32>
      %83 = arith.addf %81, %82 : vector<128x128xf32>
      %cst_42 = arith.constant 2.000000e+00 : f32
      %84 = vector.broadcast %cst_42 : f32 to vector<128x128xf32>
      %85 = arith.mulf %84, %79 : vector<128x128xf32>
      %86 = arith.subf %83, %85 : vector<128x128xf32>
      %cst_43 = arith.constant 0.000000e+00 : f32
      %87 = vector.broadcast %cst_43 : f32 to vector<128x128xf32>
      %88 = arith.maximumf %86, %87 : vector<128x128xf32>
      %89 = vector.shape_cast %88 : vector<128x128xf32> to vector<1x128x128xf32>
      %cst_44 = arith.constant dense<0xFF800000> : vector<1xf32>
      %90 = vector.multi_reduction <maximumf>, %89, %cst_44 [1, 2] : vector<1x128x128xf32> to vector<1xf32>
      %91 = vector.shape_cast %90 : vector<1xf32> to vector<1x1x1xf32>
      %92 = vector.extract %91[0, 0, 0] : f32 from vector<1x1x1xf32>
      %93 = vector.broadcast %92 : f32 to vector<1x1xf32>
      %94 = math.sqrt %93 : vector<1x1xf32>
      %c0_45 = arith.constant 0 : index
      %c0_46 = arith.constant 0 : index
      %95 = vector.load %arg10[%c0_45, %c0_46] : memref<1x1xf32, #tpu.memory_space<vmem>>, vector<1x1xf32>
      tpu.vector_store %arg10[%c0_45, %c0_46], %94 {strides = array<i32>} : memref<1x1xf32, #tpu.memory_space<vmem>>, vector<1x1xf32>,
    } else {
    }
    %c0_13 = arith.constant 0 : index
    %c0_14 = arith.constant 0 : index
    %17 = vector.load %arg10[%c0_13, %c0_14] : memref<1x1xf32, #tpu.memory_space<vmem>>, vector<1x1xf32>
    %cst_15 = arith.constant 5.000000e-01 : f32
    %18 = vector.broadcast %cst_15 : f32 to vector<1x1xf32>
    %19 = arith.mulf %18, %17 : vector<1x1xf32>
    %20 = arith.mulf %5, %5 : vector<64x8xf32>
    %cst_16 = arith.constant dense<0.000000e+00> : vector<64xf32>
    %21 = vector.multi_reduction <add>, %20, %cst_16 [1] : vector<64x8xf32> to vector<64xf32>
    %22 = vector.shape_cast %21 : vector<64xf32> to vector<64x1xf32>
    %23 = arith.mulf %7, %7 : vector<64x8xf32>
    %cst_17 = arith.constant dense<0.000000e+00> : vector<64xf32>
    %24 = vector.multi_reduction <add>, %23, %cst_17 [1] : vector<64x8xf32> to vector<64xf32>
    %25 = vector.shape_cast %24 : vector<64xf32> to vector<64x1xf32>
    %cst_18 = arith.constant dense<0.000000e+00> : vector<64x128xf32>
    %26 = tpu.matmul %5, %1, %cst_18 {dimension_numbers = #tpu.dot_dimension_numbers<[1], [0], [0], [1], [0, 0, 1, 1], [], []>} : vector<64x8xf32>, vector<8x128xf32>, vector<64x128xf32> -> vector<64x128xf32>
    %cst_19 = arith.constant dense<0.000000e+00> : vector<64x128xf32>
    %27 = tpu.matmul %7, %3, %cst_19 {dimension_numbers = #tpu.dot_dimension_numbers<[1], [0], [0], [1], [0, 0, 1, 1], [], []>} : vector<64x8xf32>, vector<8x128xf32>, vector<64x128xf32> -> vector<64x128xf32>
    %28 = vector.broadcast %22 : vector<64x1xf32> to vector<64x128xf32>
    %29 = vector.broadcast %10 : vector<1x128xf32> to vector<64x128xf32>
    %30 = arith.addf %28, %29 : vector<64x128xf32>
    %cst_20 = arith.constant 2.000000e+00 : f32
    %31 = vector.broadcast %cst_20 : f32 to vector<64x128xf32>
    %32 = arith.mulf %31, %26 : vector<64x128xf32>
    %33 = arith.subf %30, %32 : vector<64x128xf32>
    %cst_21 = arith.constant 0.000000e+00 : f32
    %34 = vector.broadcast %cst_21 : f32 to vector<64x128xf32>
    %35 = arith.maximumf %33, %34 : vector<64x128xf32>
    %36 = math.sqrt %35 : vector<64x128xf32>
    %37 = vector.broadcast %25 : vector<64x1xf32> to vector<64x128xf32>
    %38 = vector.broadcast %13 : vector<1x128xf32> to vector<64x128xf32>
    %39 = arith.addf %37, %38 : vector<64x128xf32>
    %cst_22 = arith.constant 2.000000e+00 : f32
    %40 = vector.broadcast %cst_22 : f32 to vector<64x128xf32>
    %41 = arith.mulf %40, %27 : vector<64x128xf32>
    %42 = arith.subf %39, %41 : vector<64x128xf32>
    %cst_23 = arith.constant 0.000000e+00 : f32
    %43 = vector.broadcast %cst_23 : f32 to vector<64x128xf32>
    %44 = arith.maximumf %42, %43 : vector<64x128xf32>
    %45 = math.sqrt %44 : vector<64x128xf32>
    %cst_24 = arith.constant 0.000000e+00 : f32
    %46 = vector.broadcast %cst_24 : f32 to vector<64x128xf32>
    %47 = arith.subf %46, %36 : vector<64x128xf32>
    %48 = math.exp %47 : vector<64x128xf32>
    %49 = arith.mulf %45, %48 : vector<64x128xf32>
    %50 = vector.broadcast %19 : vector<1x1xf32> to vector<64x128xf32>
    %51 = arith.cmpf ogt, %49, %50 : vector<64x128xf32>
    %52 = arith.extui %51 : vector<64x128xi1> to vector<64x128xi32>
    %53 = arith.sitofp %52 : vector<64x128xi32> to vector<64x128xf32>
    %54 = arith.mulf %45, %53 : vector<64x128xf32>
    %cst_25 = arith.constant dense<0.000000e+00> : vector<128xf32>
    %55 = vector.multi_reduction <add>, %53, %cst_25 [0] : vector<64x128xf32> to vector<128xf32>
    %56 = vector.shape_cast %55 : vector<128xf32> to vector<1x128xf32>
    %cst_26 = arith.constant dense<0.000000e+00> : vector<8x128xf32>
    %57 = tpu.matmul %7, %53, %cst_26 {dimension_numbers = #tpu.dot_dimension_numbers<[0], [0], [1], [1], [0, 1, 1, 1], [], []>} : vector<64x8xf32>, vector<64x128xf32>, vector<8x128xf32> -> vector<8x128xf32>
    %c0_27 = arith.constant 0 : index
    %c0_28 = arith.constant 0 : index
    %c0_29 = arith.constant 0 : index
    %c0_30 = arith.constant 0 : index
    %58 = vector.load %arg6[%c0_27, %c0_28, %c0_29, %c0_30] : memref<1x8x64x128xbf16, #tpu.memory_space<vmem>>, vector<1x8x64x128xbf16>
    %59 = vector.shape_cast %58 : vector<1x8x64x128xbf16> to vector<8x64x128xbf16>
    %60 = arith.extf %59 : vector<8x64x128xbf16> to vector<8x64x128xf32>
    %61 = vector.shape_cast %54 : vector<64x128xf32> to vector<1x64x128xf32>
    %62 = vector.broadcast %61 : vector<1x64x128xf32> to vector<8x64x128xf32>
    %63 = arith.mulf %60, %62 : vector<8x64x128xf32>
    %cst_31 = arith.constant dense<0.000000e+00> : vector<8x128xf32>
    %64 = vector.multi_reduction <add>, %63, %cst_31 [1] : vector<8x64x128xf32> to vector<8x128xf32>
    %c0_32 = arith.constant 0 : index
    %c0_33 = arith.constant 0 : index
    %65 = vector.load %arg9[%c0_32, %c0_33] : memref<8x128xf32, #tpu.memory_space<vmem>>, vector<8x128xf32>
    %66 = vector.broadcast %56 : vector<1x128xf32> to vector<8x128xf32>
    %67 = arith.mulf %3, %66 : vector<8x128xf32>
    %68 = arith.subf %67, %57 : vector<8x128xf32>
    %cst_34 = arith.constant 5.000000e-01 : f32
    %69 = vector.broadcast %cst_34 : f32 to vector<8x128xf32>
    %70 = arith.mulf %69, %68 : vector<8x128xf32>
    %71 = arith.addf %70, %64 : vector<8x128xf32>
    %72 = arith.addf %65, %71 : vector<8x128xf32>
    %c0_35 = arith.constant 0 : index
    %c0_36 = arith.constant 0 : index
    %73 = vector.load %arg9[%c0_35, %c0_36] : memref<8x128xf32, #tpu.memory_space<vmem>>, vector<8x128xf32>
    tpu.vector_store %arg9[%c0_35, %c0_36], %72 {strides = array<i32>} : memref<8x128xf32, #tpu.memory_space<vmem>>, vector<8x128xf32>,
    %c1_i32 = arith.constant 1 : i32
    %74 = arith.cmpi eq, %arg1, %c1_i32 : i32
    %75 = arith.extui %74 : i1 to i32
    %c0_i32_37 = arith.constant 0 : i32
    %76 = arith.cmpi ne, %75, %c0_i32_37 : i32
    scf.if %76 {
      %c0_38 = arith.constant 0 : index
      %c0_39 = arith.constant 0 : index
      %77 = vector.load %arg9[%c0_38, %c0_39] : memref<8x128xf32, #tpu.memory_space<vmem>>, vector<8x128xf32>
      %78 = arith.addf %3, %77 : vector<8x128xf32>
      %c0_40 = arith.constant 0 : index
      %c0_41 = arith.constant 0 : index
      %c0_42 = arith.constant 0 : index
      %79 = vector.load %arg8[%c0_40, %c0_41, %c0_42] : memref<1x8x128xf32, #tpu.memory_space<vmem>>, vector<1x8x128xf32>
      %80 = vector.shape_cast %79 : vector<1x8x128xf32> to vector<8x128xf32>
      %81 = vector.shape_cast %78 : vector<8x128xf32> to vector<1x8x128xf32>
      tpu.vector_store %arg8[%c0_40, %c0_41, %c0_42], %81 {strides = array<i32>} : memref<1x8x128xf32, #tpu.memory_space<vmem>>, vector<1x8x128xf32>,
      %cst_43 = arith.constant 1.000000e+00 : f32
      %82 = vector.broadcast %cst_43 : f32 to vector<8x128xf32>
      %83 = arith.mulf %78, %82 : vector<8x128xf32>
      %84 = arith.addf %1, %83 : vector<8x128xf32>
      %c0_44 = arith.constant 0 : index
      %c0_45 = arith.constant 0 : index
      %c0_46 = arith.constant 0 : index
      %85 = vector.load %arg7[%c0_44, %c0_45, %c0_46] : memref<1x8x128xf32, #tpu.memory_space<vmem>>, vector<1x8x128xf32>
      %86 = vector.shape_cast %85 : vector<1x8x128xf32> to vector<8x128xf32>
      %87 = vector.shape_cast %84 : vector<8x128xf32> to vector<1x8x128xf32>
      tpu.vector_store %arg7[%c0_44, %c0_45, %c0_46], %87 {strides = array<i32>} : memref<1x8x128xf32, #tpu.memory_space<vmem>>, vector<1x8x128xf32>,
    } else {
    }
    return
  }
  func.func @transform_0(%arg0: i32, %arg1: i32) -> (i32, i32, i32) {
    %c0_i32 = arith.constant 0 : i32
    %c0_i32_0 = arith.constant 0 : i32
    %c0_i32_1 = arith.constant 0 : i32
    return %arg0, %c0_i32, %c0_i32_0 : i32, i32, i32
  }
  func.func @transform_1(%arg0: i32, %arg1: i32) -> (i32, i32, i32) {
    %c0_i32 = arith.constant 0 : i32
    %c0_i32_0 = arith.constant 0 : i32
    %c0_i32_1 = arith.constant 0 : i32
    return %arg0, %c0_i32, %c0_i32_0 : i32, i32, i32
  }
  func.func @transform_2(%arg0: i32, %arg1: i32) -> (i32, i32, i32) {
    %c0_i32 = arith.constant 0 : i32
    %c0_i32_0 = arith.constant 0 : i32
    return %arg0, %arg1, %c0_i32 : i32, i32, i32
  }
  func.func @transform_3(%arg0: i32, %arg1: i32) -> (i32, i32, i32) {
    %c0_i32 = arith.constant 0 : i32
    %c0_i32_0 = arith.constant 0 : i32
    return %arg0, %arg1, %c0_i32 : i32, i32, i32
  }
  func.func @transform_4(%arg0: i32, %arg1: i32) -> (i32, i32, i32, i32) {
    %c0_i32 = arith.constant 0 : i32
    %c0_i32_0 = arith.constant 0 : i32
    %c0_i32_1 = arith.constant 0 : i32
    return %arg0, %c0_i32, %arg1, %c0_i32_0 : i32, i32, i32, i32
  }
  func.func @transform_5(%arg0: i32, %arg1: i32) -> (i32, i32, i32) {
    %c0_i32 = arith.constant 0 : i32
    %c0_i32_0 = arith.constant 0 : i32
    %c0_i32_1 = arith.constant 0 : i32
    return %arg0, %c0_i32, %c0_i32_0 : i32, i32, i32
  }
  func.func @transform_6(%arg0: i32, %arg1: i32) -> (i32, i32, i32) {
    %c0_i32 = arith.constant 0 : i32
    %c0_i32_0 = arith.constant 0 : i32
    %c0_i32_1 = arith.constant 0 : i32
    return %arg0, %c0_i32, %c0_i32_0 : i32, i32, i32
  }
}

</mosaic_0001>

<llo_original>
// kernel: kinet_dsmc.1
$region0: #{kinet_dsmc.1}
  #allocation0 [shape = 'u32[]', space=smem, size = 0x4, offset = 0x4, fixed_abs, tag = 'smem constant byte address 0x4 - core index']
  #allocation1 [shape = 'u32[72,128]{1,0:T(1,128)}', space=vmem, size = 0x9000, scoped, tag = 'internal scratch']
  #allocation2 [shape = 'f32[8,128]{1,0:T(8,128)}', space=vmem, size = 0x1000, scoped, tag = 'scratch operand']
  #allocation3 [shape = 'f32[1,1]{1,0:T(1,128)}', space=vmem, size = 0x200, scoped, tag = 'scratch operand']
  %s0 = inlined_call_operand.vmem [shape: f32[2,8,128], index: 0, kind: input, shape index: {}, may-alias: {0,5}]
  %s1 = inlined_call_operand.vmem [shape: f32[2,8,128], index: 1, kind: input, shape index: {}, may-alias: {1,6}]
  %s2 = inlined_call_operand.vmem [shape: f32[2,128,8], index: 2, kind: input, shape index: {}]
  %s3 = inlined_call_operand.vmem [shape: f32[2,128,8], index: 3, kind: input, shape index: {}]
  %s4 = inlined_call_operand.vmem [shape: bf16[2,8,128,128], index: 4, kind: input, shape index: {}]
  %s5 = inlined_call_operand.vmem [shape: f32[2,8,128], index: 5, kind: output, shape index: {0}, may-alias: {0,5}]
  %s6 = inlined_call_operand.vmem [shape: f32[2,8,128], index: 6, kind: output, shape index: {1}, may-alias: {1,6}]
  %7 = xla_tuple %s5, %s6
  %s8 = sld [smem:[#allocation0]]
  $region110: #{kinet_dsmc.1} parent=0
    _
  %s10 = ssub.s32 1, %s8
  %s11 = scalar_select 0, %s10, %s8
  $region1: #{kinet_dsmc.1} parent=0
    #allocation4 [shape = 'u8[262144]{0}', space=vmem, size = 0x40000, scoped, tag = 'input window, operand 4']
    loop: start=0, step=1, limit=6
    $region2: #{kinet_dsmc.1} parent=1 // loop_pre_header
      _
    $region3: #{kinet_dsmc.1} parent=1 // loop_header
      %s13 = sphi 0, %s17
      %p14 = scmp.ge.s32.totalorder %s13, 6
      %s20 = sphi 0, %s32
      %s21 = sphi 0, %s28
      %s22 = sphi 0, %s20
      %s23 = sphi 0, %s21
      %s24 = sphi 0, %s22
      %s25 = sphi 0, %s23
      %s35 = sphi 0, %s37
      %s38 = sphi 0, %s35
      %s39 = sphi 0, %s38
      %s55 = sphi 0, %s39
      %s61 = sphi 0, %s63
      %s64 = sphi 0, %s61
      %s65 = sphi 0, %s64
      %s81 = sphi 0, %s65
      %s89 = sphi 0, %s91
      %s92 = sphi 0, %s89
      %s93 = sphi 0, %s92
      %s109 = sphi 0, %s93
      %s117 = sphi 0, %s119
      %s120 = sphi 0, %s117
      %s121 = sphi 0, %s120
      %s137 = sphi 0, %s121
      %s145 = sphi 0, %s147
      %s148 = sphi 0, %s145
      %s149 = sphi 0, %s148
      %s165 = sphi 0, %s149
      %s171 = sphi 0, %s173
      %s174 = sphi 0, %s171
      %s175 = sphi 0, %s174
      %s191 = sphi 0, %s175
      %s197 = sphi 0, %s199
      %s200 = sphi 0, %s197
      %s201 = sphi 0, %s200
      %s217 = sphi 0, %s201
    $region4: #{kinet_dsmc.1} parent=1 // loop_header_branch
      %16 = sbr.rel (%p14) target = $region8
    $region5: #{kinet_dsmc.1} parent=1 // loop_body
      %s18 = ssub.s32 %s13, 1
      %s19 = ssub.s32 %s13, 2
      %s26 = sadd.s32 1, %s21
      %p27 = scmp.ge.s32.totalorder %s26, 2
      %s28 = scalar_select %p27, 0, %s26
      %s29 = sadd.s32 1, %s20
      %s30 = scalar_select %p27, %s29, %s20
      %p31 = scmp.ge.s32.totalorder %s30, 2
      %s32 = scalar_select %p31, 0, %s30
      %s33 = ssub.s32 %s20, %s32
      %p34 = scmp.eq.s32.totalorder %s33, 0
      %s36 = sadd.s32 %s35, 1
      %s37 = scalar_select %p34, %s35, %s36
      %p40 = pneg %p34
      %p41 = scmp.eq.s32.totalorder %s13, 3
      %p42 = por %p40, %p41
      %p43 = scmp.ne.s32.totalorder %s35, %s38
      %p44 = scmp.eq.s32.totalorder %s13, 0
      %p45 = por %p43, %p44
      %p46 = scmp.ne.s32.totalorder %s35, %s38
      %p47 = scmp.eq.s32.totalorder %s18, 3
      %p48 = por %p46, %p47
      %p49 = scmp.ne.s32.totalorder %s38, %s39
      %p50 = scmp.eq.s32.totalorder %s18, 0
      %p51 = por %p49, %p50
      %p52 = scmp.ne.s32.totalorder %s38, %s39
      %p53 = scmp.eq.s32.totalorder %s19, 3
      %p54 = por %p52, %p53
      %p56 = scmp.ne.s32.totalorder %s39, %s55
      %p57 = scmp.eq.s32.totalorder %s19, 0
      %p58 = por %p56, %p57
      %s59 = ssub.s32 %s20, %s32
      %p60 = scmp.eq.s32.totalorder %s59, 0
      %s62 = sadd.s32 %s61, 1
      %s63 = scalar_select %p60, %s61, %s62
      %p66 = pneg %p60
      %p67 = scmp.eq.s32.totalorder %s13, 3
      %p68 = por %p66, %p67
      %p69 = scmp.ne.s32.totalorder %s61, %s64
      %p70 = scmp.eq.s32.totalorder %s13, 0
      %p71 = por %p69, %p70
      %p72 = scmp.ne.s32.totalorder %s61, %s64
      %p73 = scmp.eq.s32.totalorder %s18, 3
      %p74 = por %p72, %p73
      %p75 = scmp.ne.s32.totalorder %s64, %s65
      %p76 = scmp.eq.s32.totalorder %s18, 0
      %p77 = por %p75, %p76
      %p78 = scmp.ne.s32.totalorder %s64, %s65
      %p79 = scmp.eq.s32.totalorder %s19, 3
      %p80 = por %p78, %p79
      %p82 = scmp.ne.s32.totalorder %s65, %s81
      %p83 = scmp.eq.s32.totalorder %s19, 0
      %p84 = por %p82, %p83
      %s85 = ssub.s32 %s20, %s32
      %s86 = ssub.s32 %s21, %s28
      %s87 = sor.u32 %s85, %s86
      %p88 = scmp.eq.s32.totalorder %s87, 0
      %s90 = sadd.s32 %s89, 1
      %s91 = scalar_select %p88, %s89, %s90
      %p94 = pneg %p88
      %p95 = scmp.eq.s32.totalorder %s13, 3
      %p96 = por %p94, %p95
      %p97 = scmp.ne.s32.totalorder %s89, %s92
      %p98 = scmp.eq.s32.totalorder %s13, 0
      %p99 = por %p97, %p98
      %p100 = scmp.ne.s32.totalorder %s89, %s92
      %p101 = scmp.eq.s32.totalorder %s18, 3
      %p102 = por %p100, %p101
      %p103 = scmp.ne.s32.totalorder %s92, %s93
      %p104 = scmp.eq.s32.totalorder %s18, 0
      %p105 = por %p103, %p104
      %p106 = scmp.ne.s32.totalorder %s92, %s93
      %p107 = scmp.eq.s32.totalorder %s19, 3
      %p108 = por %p106, %p107
      %p110 = scmp.ne.s32.totalorder %s93, %s109
      %p111 = scmp.eq.s32.totalorder %s19, 0
      %p112 = por %p110, %p111
      %s113 = ssub.s32 %s20, %s32
      %s114 = ssub.s32 %s21, %s28
      %s115 = sor.u32 %s113, %s114
      %p116 = scmp.eq.s32.totalorder %s115, 0
      %s118 = sadd.s32 %s117, 1
      %s119 = scalar_select %p116, %s117, %s118
      %p122 = pneg %p116
      %p123 = scmp.eq.s32.totalorder %s13, 3
      %p124 = por %p122, %p123
      %p125 = scmp.ne.s32.totalorder %s117, %s120
      %p126 = scmp.eq.s32.totalorder %s13, 0
      %p127 = por %p125, %p126
      %p128 = scmp.ne.s32.totalorder %s117, %s120
      %p129 = scmp.eq.s32.totalorder %s18, 3
      %p130 = por %p128, %p129
      %p131 = scmp.ne.s32.totalorder %s120, %s121
      %p132 = scmp.eq.s32.totalorder %s18, 0
      %p133 = por %p131, %p132
      %p134 = scmp.ne.s32.totalorder %s120, %s121
      %p135 = scmp.eq.s32.totalorder %s19, 3
      %p136 = por %p134, %p135
      %p138 = scmp.ne.s32.totalorder %s121, %s137
      %p139 = scmp.eq.s32.totalorder %s19, 0
      %p140 = por %p138, %p139
      %s141 = ssub.s32 %s20, %s32
      %s142 = ssub.s32 %s21, %s28
      %s143 = sor.u32 %s141, %s142
      %p144 = scmp.eq.s32.totalorder %s143, 0
      %s146 = sadd.s32 %s145, 1
      %s147 = scalar_select %p144, %s145, %s146
      %p150 = pneg %p144
      %p151 = scmp.eq.s32.totalorder %s13, 3
      %p152 = por %p150, %p151
      %p153 = scmp.ne.s32.totalorder %s145, %s148
      %p154 = scmp.eq.s32.totalorder %s13, 0
      %p155 = por %p153, %p154
      %p156 = scmp.ne.s32.totalorder %s145, %s148
      %p157 = scmp.eq.s32.totalorder %s18, 3
      %p158 = por %p156, %p157
      %p159 = scmp.ne.s32.totalorder %s148, %s149
      %p160 = scmp.eq.s32.totalorder %s18, 0
      %p161 = por %p159, %p160
      %p162 = scmp.ne.s32.totalorder %s148, %s149
      %p163 = scmp.eq.s32.totalorder %s19, 3
      %p164 = por %p162, %p163
      %p166 = scmp.ne.s32.totalorder %s149, %s165
      %p167 = scmp.eq.s32.totalorder %s19, 0
      %p168 = por %p166, %p167
      %s169 = ssub.s32 %s20, %s32
      %p170 = scmp.eq.s32.totalorder %s169, 0
      %s172 = sadd.s32 %s171, 1
      %s173 = scalar_select %p170, %s171, %s172
      %p176 = pneg %p170
      %p177 = scmp.eq.s32.totalorder %s13, 3
      %p178 = por %p176, %p177
      %p179 = scmp.ne.s32.totalorder %s171, %s174
      %p180 = scmp.eq.s32.totalorder %s13, 0
      %p181 = por %p179, %p180
      %p182 = scmp.ne.s32.totalorder %s171, %s174
      %p183 = scmp.eq.s32.totalorder %s18, 3
      %p184 = por %p182, %p183
      %p185 = scmp.ne.s32.totalorder %s174, %s175
      %p186 = scmp.eq.s32.totalorder %s18, 0
      %p187 = por %p185, %p186
      %p188 = scmp.ne.s32.totalorder %s174, %s175
      %p189 = scmp.eq.s32.totalorder %s19, 3
      %p190 = por %p188, %p189
      %p192 = scmp.ne.s32.totalorder %s175, %s191
      %p193 = scmp.eq.s32.totalorder %s19, 0
      %p194 = por %p192, %p193
      %s195 = ssub.s32 %s20, %s32
      %p196 = scmp.eq.s32.totalorder %s195, 0
      %s198 = sadd.s32 %s197, 1
      %s199 = scalar_select %p196, %s197, %s198
      %p202 = pneg %p196
      %p203 = scmp.eq.s32.totalorder %s13, 3
      %p204 = por %p202, %p203
      %p205 = scmp.ne.s32.totalorder %s197, %s200
      %p206 = scmp.eq.s32.totalorder %s13, 0
      %p207 = por %p205, %p206
      %p208 = scmp.ne.s32.totalorder %s197, %s200
      %p209 = scmp.eq.s32.totalorder %s18, 3
      %p210 = por %p208, %p209
      %p211 = scmp.ne.s32.totalorder %s200, %s201
      %p212 = scmp.eq.s32.totalorder %s18, 0
      %p213 = por %p211, %p212
      %p214 = scmp.ne.s32.totalorder %s200, %s201
      %p215 = scmp.eq.s32.totalorder %s19, 3
      %p216 = por %p214, %p215
      %p218 = scmp.ne.s32.totalorder %s201, %s217
      %p219 = scmp.eq.s32.totalorder %s19, 0
      %p220 = por %p218, %p219
      %p221 = scmp.le.s32.totalorder 1, %s13
      %p222 = scmp.lt.s32.totalorder %s13, 5
      %p223 = pnand %p221, %p222
      %p224 = pneg %p223
      // Predicated region
      $region9: #{kinet_dsmc.1} parent=5 // pred_check
        _
      $region10: #{kinet_dsmc.1} parent=5 // pred_check_branch
        %226 = sbr.rel (%p223) target = $region12
      $region11: #{kinet_dsmc.1} parent=5 // pred_region
        %s227 = ssub.s32 %s13, 1
      $region12: #{kinet_dsmc.1} parent=5 // pred_fallthru
        _
      %p228 = scmp.lt.s32.totalorder %s13, 4
      // Predicated region
      $region13: #{kinet_dsmc.1} parent=5 // pred_check
        %p229 = pneg %p228
      $region14: #{kinet_dsmc.1} parent=5 // pred_check_branch
        %231 = sbr.rel (%p229) target = $region16
      $region15: #{kinet_dsmc.1} parent=5 // pred_region
        // Predicated region
        $region17: #{kinet_dsmc.1} parent=15 // pred_check
          %p232 = pneg %p45
        $region18: #{kinet_dsmc.1} parent=15 // pred_check_branch
          %234 = sbr.rel (%p232) target = $region20
        $region19: #{kinet_dsmc.1} parent=15 // pred_region
          %p235 = scmp.lt.s32.totalorder %s20, 1
          %s236 = scalar_select %p235, %s20, 1
          %s237 = smul.addr %s236, 8
          %s238 = scalar_lea.vmem %s0, %s237
        $region20: #{kinet_dsmc.1} parent=15 // pred_fallthru
          _
        // Predicated region
        $region21: #{kinet_dsmc.1} parent=15 // pred_check
          %p239 = pneg %p71
        $region22: #{kinet_dsmc.1} parent=15 // pred_check_branch
          %241 = sbr.rel (%p239) target = $region24
        $region23: #{kinet_dsmc.1} parent=15 // pred_region
          %p242 = scmp.lt.s32.totalorder %s20, 1
          %s243 = scalar_select %p242, %s20, 1
          %s244 = smul.addr %s243, 8
          %s245 = scalar_lea.vmem %s1, %s244
        $region24: #{kinet_dsmc.1} parent=15 // pred_fallthru
          _
        // Predicated region
        $region25: #{kinet_dsmc.1} parent=15 // pred_check
          %p246 = pneg %p99
        $region26: #{kinet_dsmc.1} parent=15 // pred_check_branch
          %248 = sbr.rel (%p246) target = $region28
        $region27: #{kinet_dsmc.1} parent=15 // pred_region
          %s249 = smul.u32 8, %s21
          %p250 = scmp.lt.s32.totalorder %s20, 1
          %s251 = scalar_select %p250, %s20, 1
          %p252 = scmp.lt.s32.totalorder %s249, 15
          %s253 = scalar_select %p252, %s249, 15
          %s254 = smul.addr %s251, 16
          %s255 = sadd.s32 %s253, %s254
          %s256 = smul.addr %s255, 8
          %s257 = scalar_lea.vmem %s2, %s256
          %s258 = smul.u32 8, %s21
        $region28: #{kinet_dsmc.1} parent=15 // pred_fallthru
          _
        // Predicated region
        $region29: #{kinet_dsmc.1} parent=15 // pred_check
          %p259 = pneg %p127
        $region30: #{kinet_dsmc.1} parent=15 // pred_check_branch
          %261 = sbr.rel (%p259) target = $region32
        $region31: #{kinet_dsmc.1} parent=15 // pred_region
          %s262 = smul.u32 8, %s21
          %p263 = scmp.lt.s32.totalorder %s20, 1
          %s264 = scalar_select %p263, %s20, 1
          %p265 = scmp.lt.s32.totalorder %s262, 15
          %s266 = scalar_select %p265, %s262, 15
          %s267 = smul.addr %s264, 16
          %s268 = sadd.s32 %s266, %s267
          %s269 = smul.addr %s268, 8
          %s270 = scalar_lea.vmem %s3, %s269
          %s271 = smul.u32 8, %s21
        $region32: #{kinet_dsmc.1} parent=15 // pred_fallthru
          _
        // Predicated region
        $region33: #{kinet_dsmc.1} parent=15 // pred_check
          %p272 = pneg %p155
        $region34: #{kinet_dsmc.1} parent=15 // pred_check_branch
          %274 = sbr.rel (%p272) target = $region36
        $region35: #{kinet_dsmc.1} parent=15 // pred_region
          %s275 = sand.u32 %s145, 1
          %s276 = sand.u32 %s145, 1
          %s277 = smul.addr %s276, 256
          %s278 = scalar_lea.vmem [#allocation4], %s277
          %s279 = smul.u32 8, %s21
          %s280 = smul.addr %s20, 128
          %s281 = sadd.s32 %s279, %s280
          %s282 = smul.addr %s281, 4
          %s283 = scalar_lea.vmem %s4, %s282
          // Predicated region
          $region37: #{kinet_dsmc.1} parent=35 // pred_check
            _
          $region38: #{kinet_dsmc.1} parent=35 // pred_check_branch
            %285 = sbr.rel (0) target = $region40
          $region39: #{kinet_dsmc.1} parent=35 // pred_region
            // Predicated region
            $region41: #{kinet_dsmc.1} parent=39 // pred_check
              _
            $region42: #{kinet_dsmc.1} parent=39 // pred_check_branch
              %287 = sbr.rel target = $region44
            $region43: #{kinet_dsmc.1} parent=39 // pred_region
              // Predicated region
              $region56: #{kinet_dsmc.1} parent=43 // pred_check
                _
              $region57: #{kinet_dsmc.1} parent=43 // pred_check_branch
                %429 = sbr.rel (0) target = $region59
              $region58: #{kinet_dsmc.1} parent=43 // pred_region
                loop: start=0, step=1, limit=1
                $region60: #{kinet_dsmc.1} parent=58 // loop_pre_header
                  _
                $region61: #{kinet_dsmc.1} parent=58 // loop_header
                  %s431 = sphi 0, %s435
                  %p432 = scmp.ge.s32.totalorder %s431, 1
                  %s436 = sphi %s283, %s283
                  %s437 = sphi %s278, %s278
                $region62: #{kinet_dsmc.1} parent=58 // loop_header_branch
                  %434 = sbr.rel (%p432) target = $region66
                $region63: #{kinet_dsmc.1} parent=58 // loop_body
                  _
                $region64: #{kinet_dsmc.1} parent=58 // loop_footer
                  %s435 = sadd.s32 1, %s431
                $region65: #{kinet_dsmc.1} parent=58 // loop_footer_branch
                  %430 = sbr.rel target = $region61
                $region66: #{kinet_dsmc.1} parent=58 // loop_exit
                  _
                %s439 = ssub.s32 16, 1
                loop: start=0, step=1, limit=1
                $region67: #{kinet_dsmc.1} parent=58 // loop_pre_header
                  _
                $region68: #{kinet_dsmc.1} parent=58 // loop_header
                  %s441 = sphi 0, %s445
                  %p442 = scmp.ge.s32.totalorder %s441, 1
                  %s446 = sphi %s283, %s283
                  %s447 = sphi %s278, %s278
                $region69: #{kinet_dsmc.1} parent=58 // loop_header_branch
                  %444 = sbr.rel (%p442) target = $region73
                $region70: #{kinet_dsmc.1} parent=58 // loop_body
                  %v448 = vld [vmem:[%s446] sm:%s439]
                  %449 = vst [vmem:[%s447] sm:%s439] %v448
                  %v450 = vld [vmem:[%s446 + $0x4] sm:%s439]
                  %451 = vst [vmem:[%s447 + $0x4] sm:%s439] %v450
                  %v452 = vld [vmem:[%s446 + $0x8] sm:%s439]
                  %453 = vst [vmem:[%s447 + $0x8] sm:%s439] %v452
                  %v454 = vld [vmem:[%s446 + $0xc] sm:%s439]
                  %455 = vst [vmem:[%s447 + $0xc] sm:%s439] %v454
                  %v456 = vld [vmem:[%s446 + $0x10] sm:%s439]
                  %457 = vst [vmem:[%s447 + $0x10] sm:%s439] %v456
                  %v458 = vld [vmem:[%s446 + $0x14] sm:%s439]
                  %459 = vst [vmem:[%s447 + $0x14] sm:%s439] %v458
                  %v460 = vld [vmem:[%s446 + $0x18] sm:%s439]
                  %461 = vst [vmem:[%s447 + $0x18] sm:%s439] %v460
                  %v462 = vld [vmem:[%s446 + $0x1c] sm:%s439]
                  %463 = vst [vmem:[%s447 + $0x1c] sm:%s439] %v462
                  %v464 = vld [vmem:[%s446 + $0x40] sm:%s439]
                  %465 = vst [vmem:[%s447 + $0x20] sm:%s439] %v464
                  %v466 = vld [vmem:[%s446 + $0x44] sm:%s439]
                  %467 = vst [vmem:[%s447 + $0x24] sm:%s439] %v466
                  %v468 = vld [vmem:[%s446 + $0x48] sm:%s439]
                  %469 = vst [vmem:[%s447 + $0x28] sm:%s439] %v468
                  %v470 = vld [vmem:[%s446 + $0x4c] sm:%s439]
                  %471 = vst [vmem:[%s447 + $0x2c] sm:%s439] %v470
                  %v472 = vld [vmem:[%s446 + $0x50] sm:%s439]
                  %473 = vst [vmem:[%s447 + $0x30] sm:%s439] %v472
                  %v474 = vld [vmem:[%s446 + $0x54] sm:%s439]
                  %475 = vst [vmem:[%s447 + $0x34] sm:%s439] %v474
                  %v476 = vld [vmem:[%s446 + $0x58] sm:%s439]
                  %477 = vst [vmem:[%s447 + $0x38] sm:%s439] %v476
                  %v478 = vld [vmem:[%s446 + $0x5c] sm:%s439]
                  %479 = vst [vmem:[%s447 + $0x3c] sm:%s439] %v478
                  %v480 = vld [vmem:[%s446 + $0x80] sm:%s439]
                  %481 = vst [vmem:[%s447 + $0x40] sm:%s439] %v480
                  %v482 = vld [vmem:[%s446 + $0x84] sm:%s439]
                  %483 = vst [vmem:[%s447 + $0x44] sm:%s439] %v482
                  %v484 = vld [vmem:[%s446 + $0x88] sm:%s439]
                  %485 = vst [vmem:[%s447 + $0x48] sm:%s439] %v484
                  %v486 = vld [vmem:[%s446 + $0x8c] sm:%s439]
                  %487 = vst [vmem:[%s447 + $0x4c] sm:%s439] %v486
                  %v488 = vld [vmem:[%s446 + $0x90] sm:%s439]
                  %489 = vst [vmem:[%s447 + $0x50] sm:%s439] %v488
                  %v490 = vld [vmem:[%s446 + $0x94] sm:%s439]
                  %491 = vst [vmem:[%s447 + $0x54] sm:%s439] %v490
                  %v492 = vld [vmem:[%s446 + $0x98] sm:%s439]
                  %493 = vst [vmem:[%s447 + $0x58] sm:%s439] %v492
                  %v494 = vld [vmem:[%s446 + $0x9c] sm:%s439]
                  %495 = vst [vmem:[%s447 + $0x5c] sm:%s439] %v494
                  %v496 = vld [vmem:[%s446 + $0xc0] sm:%s439]
                  %497 = vst [vmem:[%s447 + $0x60] sm:%s439] %v496
                  %v498 = vld [vmem:[%s446 + $0xc4] sm:%s439]
                  %499 = vst [vmem:[%s447 + $0x64] sm:%s439] %v498
                  %v500 = vld [vmem:[%s446 + $0xc8] sm:%s439]
                  %501 = vst [vmem:[%s447 + $0x68] sm:%s439] %v500
                  %v502 = vld [vmem:[%s446 + $0xcc] sm:%s439]
                  %503 = vst [vmem:[%s447 + $0x6c] sm:%s439] %v502
                  %v504 = vld [vmem:[%s446 + $0xd0] sm:%s439]
                  %505 = vst [vmem:[%s447 + $0x70] sm:%s439] %v504
                  %v506 = vld [vmem:[%s446 + $0xd4] sm:%s439]
                  %507 = vst [vmem:[%s447 + $0x74] sm:%s439] %v506
                  %v508 = vld [vmem:[%s446 + $0xd8] sm:%s439]
                  %509 = vst [vmem:[%s447 + $0x78] sm:%s439] %v508
                  %v510 = vld [vmem:[%s446 + $0xdc] sm:%s439]
                  %511 = vst [vmem:[%s447 + $0x7c] sm:%s439] %v510
                  %v512 = vld [vmem:[%s446 + $0x100] sm:%s439]
                  %513 = vst [vmem:[%s447 + $0x80] sm:%s439] %v512
                  %v514 = vld [vmem:[%s446 + $0x104] sm:%s439]
                  %515 = vst [vmem:[%s447 + $0x84] sm:%s439] %v514
                  %v516 = vld [vmem:[%s446 + $0x108] sm:%s439]
                  %517 = vst [vmem:[%s447 + $0x88] sm:%s439] %v516
                  %v518 = vld [vmem:[%s446 + $0x10c] sm:%s439]
                  %519 = vst [vmem:[%s447 + $0x8c] sm:%s439] %v518
                  %v520 = vld [vmem:[%s446 + $0x110] sm:%s439]
                  %521 = vst [vmem:[%s447 + $0x90] sm:%s439] %v520
                  %v522 = vld [vmem:[%s446 + $0x114] sm:%s439]
                  %523 = vst [vmem:[%s447 + $0x94] sm:%s439] %v522
                  %v524 = vld [vmem:[%s446 + $0x118] sm:%s439]
                  %525 = vst [vmem:[%s447 + $0x98] sm:%s439] %v524
                  %v526 = vld [vmem:[%s446 + $0x11c] sm:%s439]
                  %527 = vst [vmem:[%s447 + $0x9c] sm:%s439] %v526
                  %v528 = vld [vmem:[%s446 + $0x140] sm:%s439]
                  %529 = vst [vmem:[%s447 + $0xa0] sm:%s439] %v528
                  %v530 = vld [vmem:[%s446 + $0x144] sm:%s439]
                  %531 = vst [vmem:[%s447 + $0xa4] sm:%s439] %v530
                  %v532 = vld [vmem:[%s446 + $0x148] sm:%s439]
                  %533 = vst [vmem:[%s447 + $0xa8] sm:%s439] %v532
                  %v534 = vld [vmem:[%s446 + $0x14c] sm:%s439]
                  %535 = vst [vmem:[%s447 + $0xac] sm:%s439] %v534
                  %v536 = vld [vmem:[%s446 + $0x150] sm:%s439]
                  %537 = vst [vmem:[%s447 + $0xb0] sm:%s439] %v536
                  %v538 = vld [vmem:[%s446 + $0x154] sm:%s439]
                  %539 = vst [vmem:[%s447 + $0xb4] sm:%s439] %v538
                  %v540 = vld [vmem:[%s446 + $0x158] sm:%s439]
                  %541 = vst [vmem:[%s447 + $0xb8] sm:%s439] %v540
                  %v542 = vld [vmem:[%s446 + $0x15c] sm:%s439]
                  %543 = vst [vmem:[%s447 + $0xbc] sm:%s439] %v542
                  %v544 = vld [vmem:[%s446 + $0x180] sm:%s439]
                  %545 = vst [vmem:[%s447 + $0xc0] sm:%s439] %v544
                  %v546 = vld [vmem:[%s446 + $0x184] sm:%s439]
                  %547 = vst [vmem:[%s447 + $0xc4] sm:%s439] %v546
                  %v548 = vld [vmem:[%s446 + $0x188] sm:%s439]
                  %549 = vst [vmem:[%s447 + $0xc8] sm:%s439] %v548
                  %v550 = vld [vmem:[%s446 + $0x18c] sm:%s439]
                  %551 = vst [vmem:[%s447 + $0xcc] sm:%s439] %v550
                  %v552 = vld [vmem:[%s446 + $0x190] sm:%s439]
                  %553 = vst [vmem:[%s447 + $0xd0] sm:%s439] %v552
                  %v554 = vld [vmem:[%s446 + $0x194] sm:%s439]
                  %555 = vst [vmem:[%s447 + $0xd4] sm:%s439] %v554
                  %v556 = vld [vmem:[%s446 + $0x198] sm:%s439]
                  %557 = vst [vmem:[%s447 + $0xd8] sm:%s439] %v556
                  %v558 = vld [vmem:[%s446 + $0x19c] sm:%s439]
                  %559 = vst [vmem:[%s447 + $0xdc] sm:%s439] %v558
                  %v560 = vld [vmem:[%s446 + $0x1c0] sm:%s439]
                  %561 = vst [vmem:[%s447 + $0xe0] sm:%s439] %v560
                  %v562 = vld [vmem:[%s446 + $0x1c4] sm:%s439]
                  %563 = vst [vmem:[%s447 + $0xe4] sm:%s439] %v562
                  %v564 = vld [vmem:[%s446 + $0x1c8] sm:%s439]
                  %565 = vst [vmem:[%s447 + $0xe8] sm:%s439] %v564
                  %v566 = vld [vmem:[%s446 + $0x1cc] sm:%s439]
                  %567 = vst [vmem:[%s447 + $0xec] sm:%s439] %v566
                  %v568 = vld [vmem:[%s446 + $0x1d0] sm:%s439]
                  %569 = vst [vmem:[%s447 + $0xf0] sm:%s439] %v568
                  %v570 = vld [vmem:[%s446 + $0x1d4] sm:%s439]
                  %571 = vst [vmem:[%s447 + $0xf4] sm:%s439] %v570
                  %v572 = vld [vmem:[%s446 + $0x1d8] sm:%s439]
                  %573 = vst [vmem:[%s447 + $0xf8] sm:%s439] %v572
                  %v574 = vld [vmem:[%s446 + $0x1dc] sm:%s439]
                  %575 = vst [vmem:[%s447 + $0xfc] sm:%s439] %v574
                $region71: #{kinet_dsmc.1} parent=58 // loop_footer
                  %s445 = sadd.s32 1, %s441
                $region72: #{kinet_dsmc.1} parent=58 // loop_footer_branch
                  %440 = sbr.rel target = $region68
                $region73: #{kinet_dsmc.1} parent=58 // loop_exit
                  _
              $region59: #{kinet_dsmc.1} parent=43 // pred_fallthru
                _
            $region44: #{kinet_dsmc.1} parent=39 // pred_fallthru
              _
            // Predicated region
            $region45: #{kinet_dsmc.1} parent=39 // pred_check
              _
            $region46: #{kinet_dsmc.1} parent=39 // pred_check_branch
              %289 = sbr.rel (0) target = $region48
            $region47: #{kinet_dsmc.1} parent=39 // pred_region
              %s291 = ssub.s32 16, 1
              loop: start=0, step=1, limit=1
              $region49: #{kinet_dsmc.1} parent=47 // loop_pre_header
                _
              $region50: #{kinet_dsmc.1} parent=47 // loop_header
                %s293 = sphi 0, %s297
                %p294 = scmp.ge.s32.totalorder %s293, 1
                %s298 = sphi %s283, %s283
                %s299 = sphi %s278, %s278
              $region51: #{kinet_dsmc.1} parent=47 // loop_header_branch
                %296 = sbr.rel (%p294) target = $region55
              $region52: #{kinet_dsmc.1} parent=47 // loop_body
                %v300 = vld [vmem:[%s298] sm:%s291]
                %301 = vst [vmem:[%s299] sm:%s291] %v300
                %v302 = vld [vmem:[%s298 + $0x4] sm:%s291]
                %303 = vst [vmem:[%s299 + $0x4] sm:%s291] %v302
                %v304 = vld [vmem:[%s298 + $0x8] sm:%s291]
                %305 = vst [vmem:[%s299 + $0x8] sm:%s291] %v304
                %v306 = vld [vmem:[%s298 + $0xc] sm:%s291]
                %307 = vst [vmem:[%s299 + $0xc] sm:%s291] %v306
                %v308 = vld [vmem:[%s298 + $0x10] sm:%s291]
                %309 = vst [vmem:[%s299 + $0x10] sm:%s291] %v308
                %v310 = vld [vmem:[%s298 + $0x14] sm:%s291]
                %311 = vst [vmem:[%s299 + $0x14] sm:%s291] %v310
                %v312 = vld [vmem:[%s298 + $0x18] sm:%s291]
                %313 = vst [vmem:[%s299 + $0x18] sm:%s291] %v312
                %v314 = vld [vmem:[%s298 + $0x1c] sm:%s291]
                %315 = vst [vmem:[%s299 + $0x1c] sm:%s291] %v314
                %v316 = vld [vmem:[%s298 + $0x40] sm:%s291]
                %317 = vst [vmem:[%s299 + $0x20] sm:%s291] %v316
                %v318 = vld [vmem:[%s298 + $0x44] sm:%s291]
                %319 = vst [vmem:[%s299 + $0x24] sm:%s291] %v318
                %v320 = vld [vmem:[%s298 + $0x48] sm:%s291]
                %321 = vst [vmem:[%s299 + $0x28] sm:%s291] %v320
                %v322 = vld [vmem:[%s298 + $0x4c] sm:%s291]
                %323 = vst [vmem:[%s299 + $0x2c] sm:%s291] %v322
                %v324 = vld [vmem:[%s298 + $0x50] sm:%s291]
                %325 = vst [vmem:[%s299 + $0x30] sm:%s291] %v324
                %v326 = vld [vmem:[%s298 + $0x54] sm:%s291]
                %327 = vst [vmem:[%s299 + $0x34] sm:%s291] %v326
                %v328 = vld [vmem:[%s298 + $0x58] sm:%s291]
                %329 = vst [vmem:[%s299 + $0x38] sm:%s291] %v328
                %v330 = vld [vmem:[%s298 + $0x5c] sm:%s291]
                %331 = vst [vmem:[%s299 + $0x3c] sm:%s291] %v330
                %v332 = vld [vmem:[%s298 + $0x80] sm:%s291]
                %333 = vst [vmem:[%s299 + $0x40] sm:%s291] %v332
                %v334 = vld [vmem:[%s298 + $0x84] sm:%s291]
                %335 = vst [vmem:[%s299 + $0x44] sm:%s291] %v334
                %v336 = vld [vmem:[%s298 + $0x88] sm:%s291]
                %337 = vst [vmem:[%s299 + $0x48] sm:%s291] %v336
                %v338 = vld [vmem:[%s298 + $0x8c] sm:%s291]
                %339 = vst [vmem:[%s299 + $0x4c] sm:%s291] %v338
                %v340 = vld [vmem:[%s298 + $0x90] sm:%s291]
                %341 = vst [vmem:[%s299 + $0x50] sm:%s291] %v340
                %v342 = vld [vmem:[%s298 + $0x94] sm:%s291]
                %343 = vst [vmem:[%s299 + $0x54] sm:%s291] %v342
                %v344 = vld [vmem:[%s298 + $0x98] sm:%s291]
                %345 = vst [vmem:[%s299 + $0x58] sm:%s291] %v344
                %v346 = vld [vmem:[%s298 + $0x9c] sm:%s291]
                %347 = vst [vmem:[%s299 + $0x5c] sm:%s291] %v346
                %v348 = vld [vmem:[%s298 + $0xc0] sm:%s291]
                %349 = vst [vmem:[%s299 + $0x60] sm:%s291] %v348
                %v350 = vld [vmem:[%s298 + $0xc4] sm:%s291]
                %351 = vst [vmem:[%s299 + $0x64] sm:%s291] %v350
                %v352 = vld [vmem:[%s298 + $0xc8] sm:%s291]
                %353 = vst [vmem:[%s299 + $0x68] sm:%s291] %v352
                %v354 = vld [vmem:[%s298 + $0xcc] sm:%s291]
                %355 = vst [vmem:[%s299 + $0x6c] sm:%s291] %v354
                %v356 = vld [vmem:[%s298 + $0xd0] sm:%s291]
                %357 = vst [vmem:[%s299 + $0x70] sm:%s291] %v356
                %v358 = vld [vmem:[%s298 + $0xd4] sm:%s291]
                %359 = vst [vmem:[%s299 + $0x74] sm:%s291] %v358
                %v360 = vld [vmem:[%s298 + $0xd8] sm:%s291]
                %361 = vst [vmem:[%s299 + $0x78] sm:%s291] %v360
                %v362 = vld [vmem:[%s298 + $0xdc] sm:%s291]
                %363 = vst [vmem:[%s299 + $0x7c] sm:%s291] %v362
                %v364 = vld [vmem:[%s298 + $0x100] sm:%s291]
                %365 = vst [vmem:[%s299 + $0x80] sm:%s291] %v364
                %v366 = vld [vmem:[%s298 + $0x104] sm:%s291]
                %367 = vst [vmem:[%s299 + $0x84] sm:%s291] %v366
                %v368 = vld [vmem:[%s298 + $0x108] sm:%s291]
                %369 = vst [vmem:[%s299 + $0x88] sm:%s291] %v368
                %v370 = vld [vmem:[%s298 + $0x10c] sm:%s291]
                %371 = vst [vmem:[%s299 + $0x8c] sm:%s291] %v370
                %v372 = vld [vmem:[%s298 + $0x110] sm:%s291]
                %373 = vst [vmem:[%s299 + $0x90] sm:%s291] %v372
                %v374 = vld [vmem:[%s298 + $0x114] sm:%s291]
                %375 = vst [vmem:[%s299 + $0x94] sm:%s291] %v374
                %v376 = vld [vmem:[%s298 + $0x118] sm:%s291]
                %377 = vst [vmem:[%s299 + $0x98] sm:%s291] %v376
                %v378 = vld [vmem:[%s298 + $0x11c] sm:%s291]
                %379 = vst [vmem:[%s299 + $0x9c] sm:%s291] %v378
                %v380 = vld [vmem:[%s298 + $0x140] sm:%s291]
                %381 = vst [vmem:[%s299 + $0xa0] sm:%s291] %v380
                %v382 = vld [vmem:[%s298 + $0x144] sm:%s291]
                %383 = vst [vmem:[%s299 + $0xa4] sm:%s291] %v382
                %v384 = vld [vmem:[%s298 + $0x148] sm:%s291]
                %385 = vst [vmem:[%s299 + $0xa8] sm:%s291] %v384
                %v386 = vld [vmem:[%s298 + $0x14c] sm:%s291]
                %387 = vst [vmem:[%s299 + $0xac] sm:%s291] %v386
                %v388 = vld [vmem:[%s298 + $0x150] sm:%s291]
                %389 = vst [vmem:[%s299 + $0xb0] sm:%s291] %v388
                %v390 = vld [vmem:[%s298 + $0x154] sm:%s291]
                %391 = vst [vmem:[%s299 + $0xb4] sm:%s291] %v390
                %v392 = vld [vmem:[%s298 + $0x158] sm:%s291]
                %393 = vst [vmem:[%s299 + $0xb8] sm:%s291] %v392
                %v394 = vld [vmem:[%s298 + $0x15c] sm:%s291]
                %395 = vst [vmem:[%s299 + $0xbc] sm:%s291] %v394
                %v396 = vld [vmem:[%s298 + $0x180] sm:%s291]
                %397 = vst [vmem:[%s299 + $0xc0] sm:%s291] %v396
                %v398 = vld [vmem:[%s298 + $0x184] sm:%s291]
                %399 = vst [vmem:[%s299 + $0xc4] sm:%s291] %v398
                %v400 = vld [vmem:[%s298 + $0x188] sm:%s291]
                %401 = vst [vmem:[%s299 + $0xc8] sm:%s291] %v400
                %v402 = vld [vmem:[%s298 + $0x18c] sm:%s291]
                %403 = vst [vmem:[%s299 + $0xcc] sm:%s291] %v402
                %v404 = vld [vmem:[%s298 + $0x190] sm:%s291]
                %405 = vst [vmem:[%s299 + $0xd0] sm:%s291] %v404
                %v406 = vld [vmem:[%s298 + $0x194] sm:%s291]
                %407 = vst [vmem:[%s299 + $0xd4] sm:%s291] %v406
                %v408 = vld [vmem:[%s298 + $0x198] sm:%s291]
                %409 = vst [vmem:[%s299 + $0xd8] sm:%s291] %v408
                %v410 = vld [vmem:[%s298 + $0x19c] sm:%s291]
                %411 = vst [vmem:[%s299 + $0xdc] sm:%s291] %v410
                %v412 = vld [vmem:[%s298 + $0x1c0] sm:%s291]
                %413 = vst [vmem:[%s299 + $0xe0] sm:%s291] %v412
                %v414 = vld [vmem:[%s298 + $0x1c4] sm:%s291]
                %415 = vst [vmem:[%s299 + $0xe4] sm:%s291] %v414
                %v416 = vld [vmem:[%s298 + $0x1c8] sm:%s291]
                %417 = vst [vmem:[%s299 + $0xe8] sm:%s291] %v416
                %v418 = vld [vmem:[%s298 + $0x1cc] sm:%s291]
                %419 = vst [vmem:[%s299 + $0xec] sm:%s291] %v418
                %v420 = vld [vmem:[%s298 + $0x1d0] sm:%s291]
                %421 = vst [vmem:[%s299 + $0xf0] sm:%s291] %v420
                %v422 = vld [vmem:[%s298 + $0x1d4] sm:%s291]
                %423 = vst [vmem:[%s299 + $0xf4] sm:%s291] %v422
                %v424 = vld [vmem:[%s298 + $0x1d8] sm:%s291]
                %425 = vst [vmem:[%s299 + $0xf8] sm:%s291] %v424
                %v426 = vld [vmem:[%s298 + $0x1dc] sm:%s291]
                %427 = vst [vmem:[%s299 + $0xfc] sm:%s291] %v426
              $region53: #{kinet_dsmc.1} parent=47 // loop_footer
                %s297 = sadd.s32 1, %s293
              $region54: #{kinet_dsmc.1} parent=47 // loop_footer_branch
                %292 = sbr.rel target = $region50
              $region55: #{kinet_dsmc.1} parent=47 // loop_exit
                _
            $region48: #{kinet_dsmc.1} parent=39 // pred_fallthru
              _
          $region40: #{kinet_dsmc.1} parent=35 // pred_fallthru
            _
          %576 = vnop
        $region36: #{kinet_dsmc.1} parent=15 // pred_fallthru
          _
      $region16: #{kinet_dsmc.1} parent=5 // pred_fallthru
        _
      %p577 = scmp.le.s32.totalorder 1, %s13
      %p578 = scmp.lt.s32.totalorder %s13, 5
      %p579 = pnand %p577, %p578
      %p580 = pneg %p579
      // Predicated region
      $region74: #{kinet_dsmc.1} parent=5 // pred_check
        _
      $region75: #{kinet_dsmc.1} parent=5 // pred_check_branch
        %582 = sbr.rel (%p579) target = $region77
      $region76: #{kinet_dsmc.1} parent=5 // pred_region
        %s583 = ssub.s32 %s13, 1
        %s584 = sand.u32 %s148, 1
        %s585 = sand.u32 %s148, 1
        %s586 = smul.addr %s585, 256
        %s587 = scalar_lea.vmem [#allocation4], %s586
        // Predicated region
        $region78: #{kinet_dsmc.1} parent=76 // pred_check
          %p588 = pneg %p161
        $region79: #{kinet_dsmc.1} parent=76 // pred_check_branch
          %590 = sbr.rel (%p588) target = $region81
        $region80: #{kinet_dsmc.1} parent=76 // pred_region
          _
        $region81: #{kinet_dsmc.1} parent=76 // pred_fallthru
          _
        %p591 = scmp.lt.s32.totalorder %s22, 1
        %s592 = scalar_select %p591, %s22, 1
        %s593 = smul.addr %s592, 8
        %s594 = scalar_lea.vmem %s0, %s593
        %p595 = pneg %p51
        %p596 = pneg %p48
        %p597 = scmp.lt.s32.totalorder %s22, 1
        %s598 = scalar_select %p597, %s22, 1
        %s599 = smul.addr %s598, 8
        %s600 = scalar_lea.vmem %s1, %s599
        %p601 = pneg %p77
        %p602 = pneg %p74
        %s603 = smul.u32 8, %s23
        %p604 = scmp.lt.s32.totalorder %s22, 1
        %s605 = scalar_select %p604, %s22, 1
        %p606 = scmp.lt.s32.totalorder %s603, 15
        %s607 = scalar_select %p606, %s603, 15
        %s608 = smul.addr %s605, 16
        %s609 = sadd.s32 %s607, %s608
        %s610 = smul.addr %s609, 8
        %s611 = scalar_lea.vmem %s2, %s610
        %p612 = pneg %p105
        %p613 = pneg %p102
        %s614 = smul.u32 8, %s23
        %p615 = scmp.lt.s32.totalorder %s22, 1
        %s616 = scalar_select %p615, %s22, 1
        %p617 = scmp.lt.s32.totalorder %s614, 15
        %s618 = scalar_select %p617, %s614, 15
        %s619 = smul.addr %s616, 16
        %s620 = sadd.s32 %s618, %s619
        %s621 = smul.addr %s620, 8
        %s622 = scalar_lea.vmem %s3, %s621
        %p623 = pneg %p133
        %p624 = pneg %p130
        %s625 = sand.u32 %s148, 1
        %s626 = sand.u32 %s148, 1
        %s627 = smul.addr %s626, 256
        %s628 = scalar_lea.vmem [#allocation4], %s627
        %p629 = pneg %p161
        %p630 = pneg %p158
        %p631 = pneg %p187
        %p632 = pneg %p184
        %p633 = scmp.lt.s32.totalorder %s22, 1
        %s634 = scalar_select %p633, %s22, 1
        %s635 = smul.addr %s634, 8
        %s636 = scalar_lea.vmem %s5, %s635
        %p637 = pneg %p213
        %p638 = pneg %p210
        %p639 = scmp.lt.s32.totalorder %s22, 1
        %s640 = scalar_select %p639, %s22, 1
        %s641 = smul.addr %s640, 8
        %s642 = scalar_lea.vmem %s6, %s641
        %p643 = scmp.lt.s32.totalorder %s22, 1
        %s644 = scalar_select %p643, %s22, 1
        %s645 = smul.addr %s644, 8
        %s646 = scalar_lea.vmem %s0, %s645
        %p647 = scmp.lt.s32.totalorder %s22, 1
        %s648 = scalar_select %p647, %s22, 1
        %s649 = smul.addr %s648, 8
        %s650 = scalar_lea.vmem %s1, %s649
        %s651 = smul.u32 8, %s23
        %p652 = scmp.lt.s32.totalorder %s22, 1
        %s653 = scalar_select %p652, %s22, 1
        %p654 = scmp.lt.s32.totalorder %s651, 15
        %s655 = scalar_select %p654, %s651, 15
        %s656 = smul.addr %s653, 16
        %s657 = sadd.s32 %s655, %s656
        %s658 = smul.addr %s657, 8
        %s659 = scalar_lea.vmem %s2, %s658
        %s660 = smul.u32 8, %s23
        %s661 = smul.u32 8, %s23
        %p662 = scmp.lt.s32.totalorder %s22, 1
        %s663 = scalar_select %p662, %s22, 1
        %p664 = scmp.lt.s32.totalorder %s661, 15
        %s665 = scalar_select %p664, %s661, 15
        %s666 = smul.addr %s663, 16
        %s667 = sadd.s32 %s665, %s666
        %s668 = smul.addr %s667, 8
        %s669 = scalar_lea.vmem %s3, %s668
        %s670 = smul.u32 8, %s23
        %s671 = smul.u32 8, %s23
        %p672 = scmp.lt.s32.totalorder %s22, 1
        %s673 = scalar_select %p672, %s22, 1
        %s674 = smul.addr %s673, 8
        %s675 = scalar_lea.vmem %s5, %s674
        %p676 = scmp.lt.s32.totalorder %s22, 1
        %s677 = scalar_select %p676, %s22, 1
        %s678 = smul.addr %s677, 8
        %s679 = scalar_lea.vmem %s6, %s678
        %v680 = vld [vmem:[%s646] sm:$0xff]
        %v681 = vld [vmem:[%s650] sm:$0xff]
        %v682 = vld [vmem:[%s659] sm:$0xff]
        %v683 = vld [vmem:[%s659 + $0x8] sm:$0xff]
        %v684 = vld [vmem:[%s659 + $0x10] sm:$0xff]
        %v685 = vld [vmem:[%s659 + $0x18] sm:$0xff]
        %v686 = vld [vmem:[%s659 + $0x20] sm:$0xff]
        %v687 = vld [vmem:[%s659 + $0x28] sm:$0xff]
        %v688 = vld [vmem:[%s659 + $0x30] sm:$0xff]
        %v689 = vld [vmem:[%s659 + $0x38] sm:$0xff]
        %v690 = vld [vmem:[%s669] sm:$0xff]
        %v691 = vld [vmem:[%s669 + $0x8] sm:$0xff]
        %v692 = vld [vmem:[%s669 + $0x10] sm:$0xff]
        %v693 = vld [vmem:[%s669 + $0x18] sm:$0xff]
        %v694 = vld [vmem:[%s669 + $0x20] sm:$0xff]
        %v695 = vld [vmem:[%s669 + $0x28] sm:$0xff]
        %v696 = vld [vmem:[%s669 + $0x30] sm:$0xff]
        %v697 = vld [vmem:[%s669 + $0x38] sm:$0xff]
        %v698 = vmul.f32 %v680, %v680
        %v699 = vrot.slane %v698, 4
        %v700 = vadd.f32 %v698, %v699
        %v701 = vrot.slane %v700, 2
        %v702 = vadd.f32 %v700, %v701
        %v703 = vrot.slane %v702, 1
        %v704 = vadd.f32 %v702, %v703
        %v705 = vmul.f32 %v681, %v681
        %v706 = vrot.slane %v705, 4
        %v707 = vadd.f32 %v705, %v706
        %v708 = vrot.slane %v707, 2
        %v709 = vadd.f32 %v707, %v708
        %v710 = vrot.slane %v709, 1
        %v711 = vadd.f32 %v709, %v710
        %p712 = scmp.eq.s32.totalorder %s23, 0
        // Predicated region
        $region82: #{kinet_dsmc.1} parent=76 // pred_check
          %p713 = pneg %p712
        $region83: #{kinet_dsmc.1} parent=76 // pred_check_branch
          %715 = sbr.rel (%p713) target = $region85
        $region84: #{kinet_dsmc.1} parent=76 // pred_region
          %716 = vst [vmem:[#allocation2] sm:$0xff] 0.0
          %717 = vxpose.xlu0.b32.start [1/16] %v681, 128
          %718 = vxpose.xlu0.b32.cont [2/16] 0.0, 128
          %719 = vxpose.xlu0.b32.cont [3/16] 0.0, 128
          %720 = vxpose.xlu0.b32.cont [4/16] 0.0, 128
          %721 = vxpose.xlu0.b32.cont [5/16] 0.0, 128
          %722 = vxpose.xlu0.b32.cont [6/16] 0.0, 128
          %723 = vxpose.xlu0.b32.cont [7/16] 0.0, 128
          %724 = vxpose.xlu0.b32.cont [8/16] 0.0, 128
          %725 = vxpose.xlu0.b32.cont [9/16] 0.0, 128
          %726 = vxpose.xlu0.b32.cont [10/16] 0.0, 128
          %727 = vxpose.xlu0.b32.cont [11/16] 0.0, 128
          %728 = vxpose.xlu0.b32.cont [12/16] 0.0, 128
          %729 = vxpose.xlu0.b32.cont [13/16] 0.0, 128
          %730 = vxpose.xlu0.b32.cont [14/16] 0.0, 128
          %731 = vxpose.xlu0.b32.cont [15/16] 0.0, 128
          %732 = vxpose.xlu0.b32.end [16/16] 0.0, 128
          %v733 = vpop.trf.xlu0
          %v734 = vpop.trf.xlu0
          %v735 = vpop.trf.xlu0
          %v736 = vpop.trf.xlu0
          %v737 = vpop.trf.xlu0
          %v738 = vpop.trf.xlu0
          %v739 = vpop.trf.xlu0
          %v740 = vpop.trf.xlu0
          %v741 = vpop.trf.xlu0
          %v742 = vpop.trf.xlu0
          %v743 = vpop.trf.xlu0
          %v744 = vpop.trf.xlu0
          %v745 = vpop.trf.xlu0
          %v746 = vpop.trf.xlu0
          %v747 = vpop.trf.xlu0
          %v748 = vpop.trf.xlu0
          %vm749 = vcmask 64512
          %v751 = vsel %vm749, %v733, 0
          %v754 = vsel %vm749, %v734, 0
          %v757 = vsel %vm749, %v735, 0
          %v760 = vsel %vm749, %v736, 0
          %v763 = vsel %vm749, %v737, 0
          %v766 = vsel %vm749, %v738, 0
          %v769 = vsel %vm749, %v739, 0
          %v772 = vsel %vm749, %v740, 0
          %v775 = vsel %vm749, %v741, 0
          %v778 = vsel %vm749, %v742, 0
          %v781 = vsel %vm749, %v743, 0
          %v784 = vsel %vm749, %v744, 0
          %v787 = vsel %vm749, %v745, 0
          %v790 = vsel %vm749, %v746, 0
          %v793 = vsel %vm749, %v747, 0
          %v796 = vsel %vm749, %v748, 0
          %798 = vmatpush.msra.mxu0 0.0
          %799 = vmatpush.msra.mxu0 0.0
          %800 = vmatpush.msra.mxu0 0.0
          %801 = vmatpush.msra.mxu0 0.0
          %802 = vmatpush.msra.mxu0 0.0
          %803 = vmatpush.msra.mxu0 0.0
          %804 = vmatpush.msra.mxu0 0.0
          %805 = vmatpush.msra.mxu0 0.0
          %806 = vmatpush.msra.mxu0 0.0
          %807 = vmatpush.msra.mxu0 0.0
          %808 = vmatpush.msra.mxu0 0.0
          %809 = vmatpush.msra.mxu0 0.0
          %810 = vmatpush.msra.mxu0 0.0
          %811 = vmatpush.msra.mxu0 0.0
          %812 = vmatpush.msra.mxu0 0.0
          %813 = vmatpush.msra.mxu0 %v681
          %814 = vmatmul.f32.gmra.mxu0 %v751
          %v815 = vpop.f32.mrf.mxu0
          %v816 = vadd.f32 0.0, %v815
          %817 = vmatmul.f32.gmra.mxu0 %v754
          %v818 = vpop.f32.mrf.mxu0
          %v819 = vadd.f32 0.0, %v818
          %820 = vmatmul.f32.gmra.mxu0 %v757
          %v821 = vpop.f32.mrf.mxu0
          %v822 = vadd.f32 0.0, %v821
          %823 = vmatmul.f32.gmra.mxu0 %v760
          %v824 = vpop.f32.mrf.mxu0
          %v825 = vadd.f32 0.0, %v824
          %826 = vmatmul.f32.gmra.mxu0 %v763
          %v827 = vpop.f32.mrf.mxu0
          %v828 = vadd.f32 0.0, %v827
          %829 = vmatmul.f32.gmra.mxu0 %v766
          %v830 = vpop.f32.mrf.mxu0
          %v831 = vadd.f32 0.0, %v830
          %832 = vmatmul.f32.gmra.mxu0 %v769
          %v833 = vpop.f32.mrf.mxu0
          %v834 = vadd.f32 0.0, %v833
          %835 = vmatmul.f32.gmra.mxu0 %v772
          %v836 = vpop.f32.mrf.mxu0
          %v837 = vadd.f32 0.0, %v836
          %838 = vmatmul.f32.gmra.mxu0 %v775
          %v839 = vpop.f32.mrf.mxu0
          %v840 = vadd.f32 0.0, %v839
          %841 = vmatmul.f32.gmra.mxu0 %v778
          %v842 = vpop.f32.mrf.mxu0
          %v843 = vadd.f32 0.0, %v842
          %844 = vmatmul.f32.gmra.mxu0 %v781
          %v845 = vpop.f32.mrf.mxu0
          %v846 = vadd.f32 0.0, %v845
          %847 = vmatmul.f32.gmra.mxu0 %v784
          %v848 = vpop.f32.mrf.mxu0
          %v849 = vadd.f32 0.0, %v848
          %850 = vmatmul.f32.gmra.mxu0 %v787
          %v851 = vpop.f32.mrf.mxu0
          %v852 = vadd.f32 0.0, %v851
          %853 = vmatmul.f32.gmra.mxu0 %v790
          %v854 = vpop.f32.mrf.mxu0
          %v855 = vadd.f32 0.0, %v854
          %856 = vmatmul.f32.gmra.mxu0 %v793
          %v857 = vpop.f32.mrf.mxu0
          %v858 = vadd.f32 0.0, %v857
          %859 = vmatmul.f32.gmra.mxu0 %v796
          %v860 = vpop.f32.mrf.mxu0
          %v861 = vadd.f32 0.0, %v860
          %862 = vdwg.mxu0
          %863 = vxpose.xlu0.b32.start [1/16] %v711, 128
          %864 = vxpose.xlu0.b32.cont [2/16] 0.0, 128
          %865 = vxpose.xlu0.b32.cont [3/16] 0.0, 128
          %866 = vxpose.xlu0.b32.cont [4/16] 0.0, 128
          %867 = vxpose.xlu0.b32.cont [5/16] 0.0, 128
          %868 = vxpose.xlu0.b32.cont [6/16] 0.0, 128
          %869 = vxpose.xlu0.b32.cont [7/16] 0.0, 128
          %870 = vxpose.xlu0.b32.cont [8/16] 0.0, 128
          %871 = vxpose.xlu0.b32.cont [9/16] 0.0, 128
          %872 = vxpose.xlu0.b32.cont [10/16] 0.0, 128
          %873 = vxpose.xlu0.b32.cont [11/16] 0.0, 128
          %874 = vxpose.xlu0.b32.cont [12/16] 0.0, 128
          %875 = vxpose.xlu0.b32.cont [13/16] 0.0, 128
          %876 = vxpose.xlu0.b32.cont [14/16] 0.0, 128
          %877 = vxpose.xlu0.b32.cont [15/16] 0.0, 128
          %878 = vxpose.xlu0.b32.end [16/16] 0.0, 128
          %v879 = vpop.trf.xlu0
          %v880 = vpop.trf.xlu0
          %v881 = vpop.trf.xlu0
          %v882 = vpop.trf.xlu0
          %v883 = vpop.trf.xlu0
          %v884 = vpop.trf.xlu0
          %v885 = vpop.trf.xlu0
          %v886 = vpop.trf.xlu0
          %v887 = vpop.trf.xlu0
          %v888 = vpop.trf.xlu0
          %v889 = vpop.trf.xlu0
          %v890 = vpop.trf.xlu0
          %v891 = vpop.trf.xlu0
          %v892 = vpop.trf.xlu0
          %v893 = vpop.trf.xlu0
          %v894 = vpop.trf.xlu0
          %896 = vset.pattern.permute.xlu0 0
          %897 = vperm.xlu0 %896, %v879
          %v898 = vpop.permute.xlu0 %897
          %901 = vset.pattern.permute.xlu0 0
          %902 = vperm.xlu0 %901, %v880
          %v903 = vpop.permute.xlu0 %902
          %906 = vset.pattern.permute.xlu0 0
          %907 = vperm.xlu0 %906, %v881
          %v908 = vpop.permute.xlu0 %907
          %911 = vset.pattern.permute.xlu0 0
          %912 = vperm.xlu0 %911, %v882
          %v913 = vpop.permute.xlu0 %912
          %916 = vset.pattern.permute.xlu0 0
          %917 = vperm.xlu0 %916, %v883
          %v918 = vpop.permute.xlu0 %917
          %921 = vset.pattern.permute.xlu0 0
          %922 = vperm.xlu0 %921, %v884
          %v923 = vpop.permute.xlu0 %922
          %926 = vset.pattern.permute.xlu0 0
          %927 = vperm.xlu0 %926, %v885
          %v928 = vpop.permute.xlu0 %927
          %931 = vset.pattern.permute.xlu0 0
          %932 = vperm.xlu0 %931, %v886
          %v933 = vpop.permute.xlu0 %932
          %936 = vset.pattern.permute.xlu0 0
          %937 = vperm.xlu0 %936, %v887
          %v938 = vpop.permute.xlu0 %937
          %941 = vset.pattern.permute.xlu0 0
          %942 = vperm.xlu0 %941, %v888
          %v943 = vpop.permute.xlu0 %942
          %946 = vset.pattern.permute.xlu0 0
          %947 = vperm.xlu0 %946, %v889
          %v948 = vpop.permute.xlu0 %947
          %951 = vset.pattern.permute.xlu0 0
          %952 = vperm.xlu0 %951, %v890
          %v953 = vpop.permute.xlu0 %952
          %956 = vset.pattern.permute.xlu0 0
          %957 = vperm.xlu0 %956, %v891
          %v958 = vpop.permute.xlu0 %957
          %961 = vset.pattern.permute.xlu0 0
          %962 = vperm.xlu0 %961, %v892
          %v963 = vpop.permute.xlu0 %962
          %966 = vset.pattern.permute.xlu0 0
          %967 = vperm.xlu0 %966, %v893
          %v968 = vpop.permute.xlu0 %967
          %971 = vset.pattern.permute.xlu0 0
          %972 = vperm.xlu0 %971, %v894
          %v973 = vpop.permute.xlu0 %972
          %v975 = vadd.f32 %v711, %v898
          %v976 = vadd.f32 %v711, %v903
          %v977 = vadd.f32 %v711, %v908
          %v978 = vadd.f32 %v711, %v913
          %v979 = vadd.f32 %v711, %v918
          %v980 = vadd.f32 %v711, %v923
          %v981 = vadd.f32 %v711, %v928
          %v982 = vadd.f32 %v711, %v933
          %v983 = vadd.f32 %v711, %v938
          %v984 = vadd.f32 %v711, %v943
          %v985 = vadd.f32 %v711, %v948
          %v986 = vadd.f32 %v711, %v953
          %v987 = vadd.f32 %v711, %v958
          %v988 = vadd.f32 %v711, %v963
          %v989 = vadd.f32 %v711, %v968
          %v990 = vadd.f32 %v711, %v973
          %v991 = vmul.f32 %v816, 2.0
          %v992 = vmul.f32 %v819, 2.0
          %v993 = vmul.f32 %v822, 2.0
          %v994 = vmul.f32 %v825, 2.0
          %v995 = vmul.f32 %v828, 2.0
          %v996 = vmul.f32 %v831, 2.0
          %v997 = vmul.f32 %v834, 2.0
          %v998 = vmul.f32 %v837, 2.0
          %v999 = vmul.f32 %v840, 2.0
          %v1000 = vmul.f32 %v843, 2.0
          %v1001 = vmul.f32 %v846, 2.0
          %v1002 = vmul.f32 %v849, 2.0
          %v1003 = vmul.f32 %v852, 2.0
          %v1004 = vmul.f32 %v855, 2.0
          %v1005 = vmul.f32 %v858, 2.0
          %v1006 = vmul.f32 %v861, 2.0
          %v1007 = vsub.f32 %v975, %v991
          %v1008 = vsub.f32 %v976, %v992
          %v1009 = vsub.f32 %v977, %v993
          %v1010 = vsub.f32 %v978, %v994
          %v1011 = vsub.f32 %v979, %v995
          %v1012 = vsub.f32 %v980, %v996
          %v1013 = vsub.f32 %v981, %v997
          %v1014 = vsub.f32 %v982, %v998
          %v1015 = vsub.f32 %v983, %v999
          %v1016 = vsub.f32 %v984, %v1000
          %v1017 = vsub.f32 %v985, %v1001
          %v1018 = vsub.f32 %v986, %v1002
          %v1019 = vsub.f32 %v987, %v1003
          %v1020 = vsub.f32 %v988, %v1004
          %v1021 = vsub.f32 %v989, %v1005
          %v1022 = vsub.f32 %v990, %v1006
          %v1023 = vmax.f32 %v1007, 0.0
          %v1024 = vmax.f32 %v1008, 0.0
          %v1025 = vmax.f32 %v1009, 0.0
          %v1026 = vmax.f32 %v1010, 0.0
          %v1027 = vmax.f32 %v1011, 0.0
          %v1028 = vmax.f32 %v1012, 0.0
          %v1029 = vmax.f32 %v1013, 0.0
          %v1030 = vmax.f32 %v1014, 0.0
          %v1031 = vmax.f32 %v1015, 0.0
          %v1032 = vmax.f32 %v1016, 0.0
          %v1033 = vmax.f32 %v1017, 0.0
          %v1034 = vmax.f32 %v1018, 0.0
          %v1035 = vmax.f32 %v1019, 0.0
          %v1036 = vmax.f32 %v1020, 0.0
          %v1037 = vmax.f32 %v1021, 0.0
          %v1038 = vmax.f32 %v1022, 0.0
          %v1039 = vmax.f32 %v1023, %v1027
          %v1040 = vmax.f32 %v1024, %v1028
          %v1041 = vmax.f32 %v1025, %v1029
          %v1042 = vmax.f32 %v1026, %v1030
          %v1043 = vmax.f32 %v1039, %v1031
          %v1044 = vmax.f32 %v1040, %v1032
          %v1045 = vmax.f32 %v1041, %v1033
          %v1046 = vmax.f32 %v1042, %v1034
          %v1047 = vmax.f32 %v1043, %v1035
          %v1048 = vmax.f32 %v1044, %v1036
          %v1049 = vmax.f32 %v1045, %v1037
          %v1050 = vmax.f32 %v1046, %v1038
          %v1051 = vmax.f32 %v1047, %v1048
          %v1052 = vmax.f32 %v1049, %v1050
          %v1053 = vmax.f32 %v1051, %v1052
          %1054 = vmax.xlane.f32.xlu0 %v1053
          %v1055 = vpop.xlane.xlu0 %1054
          %v1056 = vrot.slane %v1055, 4
          %v1057 = vmax.f32 %v1055, %v1056
          %v1058 = vrot.slane %v1057, 2
          %v1059 = vmax.f32 %v1057, %v1058
          %v1060 = vrot.slane %v1059, 1
          %v1061 = vmax.f32 %v1059, %v1060
          %s1062 = vtos %v1061
          %v1063 = vstv %s1062
          %v1064 = vrsqrt.pop %v1063
          %v1065 = vmul.f32 %v1064, %v1063
          %v1066 = vmul.f32 %v1065, %v1064
          %v1067 = vmul.f32 0.5, %v1066
          %v1068 = vsub.f32 1.5, %v1067
          %v1069 = vmul.f32 %v1064, %v1068
          %v1070 = vmul.f32 %v1063, %v1069
          %vm1071 = vcmp.eq.f32.partialorder %v1063, inf
          %v1072 = vsel %vm1071, %v1063, %v1070
          %vm1073 = vcmp.eq.f32.partialorder %v1063, 0.0
          %v1074 = vand.u32 %v1063, 2147483648
          %v1075 = vsel %vm1073, %v1074, %v1072
          %vm1076 = vcmask 0
          %1077 = vst.msk [vmem:[#allocation3] sm:$0x1] %vm1076, %v1075
        $region85: #{kinet_dsmc.1} parent=76 // pred_fallthru
          _
        %v1078 = vld [vmem:[#allocation3] sm:$0x1]
        %v1079 = vmul.f32 %v1078, 0.5
        %v1080 = vmul.f32 %v682, %v682
        %v1081 = vmul.f32 %v683, %v683
        %v1082 = vmul.f32 %v684, %v684
        %v1083 = vmul.f32 %v685, %v685
        %v1084 = vmul.f32 %v686, %v686
        %v1085 = vmul.f32 %v687, %v687
        %v1086 = vmul.f32 %v688, %v688
        %v1087 = vmul.f32 %v689, %v689
        %vm1088 = vcmask 64512
        %v1089 = vsel %vm1088, %v1080, 0.0
        %1090 = vadd.xlane.f32.xlu0 %v1089
        %v1091 = vpop.xlane.xlu0 %1090
        %v1092 = vsel %vm1088, %v1081, 0.0
        %1093 = vadd.xlane.f32.xlu0 %v1092
        %v1094 = vpop.xlane.xlu0 %1093
        %v1095 = vsel %vm1088, %v1082, 0.0
        %1096 = vadd.xlane.f32.xlu0 %v1095
        %v1097 = vpop.xlane.xlu0 %1096
        %v1098 = vsel %vm1088, %v1083, 0.0
        %1099 = vadd.xlane.f32.xlu0 %v1098
        %v1100 = vpop.xlane.xlu0 %1099
        %v1101 = vsel %vm1088, %v1084, 0.0
        %1102 = vadd.xlane.f32.xlu0 %v1101
        %v1103 = vpop.xlane.xlu0 %1102
        %v1104 = vsel %vm1088, %v1085, 0.0
        %1105 = vadd.xlane.f32.xlu0 %v1104
        %v1106 = vpop.xlane.xlu0 %1105
        %v1107 = vsel %vm1088, %v1086, 0.0
        %1108 = vadd.xlane.f32.xlu0 %v1107
        %v1109 = vpop.xlane.xlu0 %1108
        %v1110 = vsel %vm1088, %v1087, 0.0
        %1111 = vadd.xlane.f32.xlu0 %v1110
        %v1112 = vpop.xlane.xlu0 %1111
        %v1113 = vmul.f32 %v690, %v690
        %v1114 = vmul.f32 %v691, %v691
        %v1115 = vmul.f32 %v692, %v692
        %v1116 = vmul.f32 %v693, %v693
        %v1117 = vmul.f32 %v694, %v694
        %v1118 = vmul.f32 %v695, %v695
        %v1119 = vmul.f32 %v696, %v696
        %v1120 = vmul.f32 %v697, %v697
        %v1121 = vsel %vm1088, %v1113, 0.0
        %1122 = vadd.xlane.f32.xlu0 %v1121
        %v1123 = vpop.xlane.xlu0 %1122
        %v1124 = vsel %vm1088, %v1114, 0.0
        %1125 = vadd.xlane.f32.xlu0 %v1124
        %v1126 = vpop.xlane.xlu0 %1125
        %v1127 = vsel %vm1088, %v1115, 0.0
        %1128 = vadd.xlane.f32.xlu0 %v1127
        %v1129 = vpop.xlane.xlu0 %1128
        %v1130 = vsel %vm1088, %v1116, 0.0
        %1131 = vadd.xlane.f32.xlu0 %v1130
        %v1132 = vpop.xlane.xlu0 %1131
        %v1133 = vsel %vm1088, %v1117, 0.0
        %1134 = vadd.xlane.f32.xlu0 %v1133
        %v1135 = vpop.xlane.xlu0 %1134
        %v1136 = vsel %vm1088, %v1118, 0.0
        %1137 = vadd.xlane.f32.xlu0 %v1136
        %v1138 = vpop.xlane.xlu0 %1137
        %v1139 = vsel %vm1088, %v1119, 0.0
        %1140 = vadd.xlane.f32.xlu0 %v1139
        %v1141 = vpop.xlane.xlu0 %1140
        %v1142 = vsel %vm1088, %v1120, 0.0
        %1143 = vadd.xlane.f32.xlu0 %v1142
        %v1144 = vpop.xlane.xlu0 %1143
        %v1146 = vsel %vm1088, %v682, 0
        %v1149 = vsel %vm1088, %v683, 0
        %v1152 = vsel %vm1088, %v684, 0
        %v1155 = vsel %vm1088, %v685, 0
        %v1158 = vsel %vm1088, %v686, 0
        %v1161 = vsel %vm1088, %v687, 0
        %v1164 = vsel %vm1088, %v688, 0
        %v1167 = vsel %vm1088, %v689, 0
        %1169 = vmatpush.msra.mxu0 0.0
        %1170 = vmatpush.msra.mxu0 0.0
        %1171 = vmatpush.msra.mxu0 0.0
        %1172 = vmatpush.msra.mxu0 0.0
        %1173 = vmatpush.msra.mxu0 0.0
        %1174 = vmatpush.msra.mxu0 0.0
        %1175 = vmatpush.msra.mxu0 0.0
        %1176 = vmatpush.msra.mxu0 0.0
        %1177 = vmatpush.msra.mxu0 0.0
        %1178 = vmatpush.msra.mxu0 0.0
        %1179 = vmatpush.msra.mxu0 0.0
        %1180 = vmatpush.msra.mxu0 0.0
        %1181 = vmatpush.msra.mxu0 0.0
        %1182 = vmatpush.msra.mxu0 0.0
        %1183 = vmatpush.msra.mxu0 0.0
        %1184 = vmatpush.msra.mxu0 %v680
        %1185 = vmatmul.f32.gmra.mxu0 %v1146
        %v1186 = vpop.f32.mrf.mxu0
        %v1187 = vadd.f32 0.0, %v1186
        %1188 = vmatmul.f32.gmra.mxu0 %v1149
        %v1189 = vpop.f32.mrf.mxu0
        %v1190 = vadd.f32 0.0, %v1189
        %1191 = vmatmul.f32.gmra.mxu0 %v1152
        %v1192 = vpop.f32.mrf.mxu0
        %v1193 = vadd.f32 0.0, %v1192
        %1194 = vmatmul.f32.gmra.mxu0 %v1155
        %v1195 = vpop.f32.mrf.mxu0
        %v1196 = vadd.f32 0.0, %v1195
        %1197 = vmatmul.f32.gmra.mxu0 %v1158
        %v1198 = vpop.f32.mrf.mxu0
        %v1199 = vadd.f32 0.0, %v1198
        %1200 = vmatmul.f32.gmra.mxu0 %v1161
        %v1201 = vpop.f32.mrf.mxu0
        %v1202 = vadd.f32 0.0, %v1201
        %1203 = vmatmul.f32.gmra.mxu0 %v1164
        %v1204 = vpop.f32.mrf.mxu0
        %v1205 = vadd.f32 0.0, %v1204
        %1206 = vmatmul.f32.gmra.mxu0 %v1167
        %v1207 = vpop.f32.mrf.mxu0
        %v1208 = vadd.f32 0.0, %v1207
        %1209 = vdwg.mxu0
        %v1211 = vsel %vm1088, %v690, 0
        %v1214 = vsel %vm1088, %v691, 0
        %v1217 = vsel %vm1088, %v692, 0
        %v1220 = vsel %vm1088, %v693, 0
        %v1223 = vsel %vm1088, %v694, 0
        %v1226 = vsel %vm1088, %v695, 0
        %v1229 = vsel %vm1088, %v696, 0
        %v1232 = vsel %vm1088, %v697, 0
        %1234 = vmatpush.msra.mxu0 0.0
        %1235 = vmatpush.msra.mxu0 0.0
        %1236 = vmatpush.msra.mxu0 0.0
        %1237 = vmatpush.msra.mxu0 0.0
        %1238 = vmatpush.msra.mxu0 0.0
        %1239 = vmatpush.msra.mxu0 0.0
        %1240 = vmatpush.msra.mxu0 0.0
        %1241 = vmatpush.msra.mxu0 0.0
        %1242 = vmatpush.msra.mxu0 0.0
        %1243 = vmatpush.msra.mxu0 0.0
        %1244 = vmatpush.msra.mxu0 0.0
        %1245 = vmatpush.msra.mxu0 0.0
        %1246 = vmatpush.msra.mxu0 0.0
        %1247 = vmatpush.msra.mxu0 0.0
        %1248 = vmatpush.msra.mxu0 0.0
        %1249 = vmatpush.msra.mxu0 %v681
        %1250 = vmatmul.f32.gmra.mxu0 %v1211
        %v1251 = vpop.f32.mrf.mxu0
        %v1252 = vadd.f32 0.0, %v1251
        %1253 = vmatmul.f32.gmra.mxu0 %v1214
        %v1254 = vpop.f32.mrf.mxu0
        %v1255 = vadd.f32 0.0, %v1254
        %1256 = vmatmul.f32.gmra.mxu0 %v1217
        %v1257 = vpop.f32.mrf.mxu0
        %v1258 = vadd.f32 0.0, %v1257
        %1259 = vmatmul.f32.gmra.mxu0 %v1220
        %v1260 = vpop.f32.mrf.mxu0
        %v1261 = vadd.f32 0.0, %v1260
        %1262 = vmatmul.f32.gmra.mxu0 %v1223
        %v1263 = vpop.f32.mrf.mxu0
        %v1264 = vadd.f32 0.0, %v1263
        %1265 = vmatmul.f32.gmra.mxu0 %v1226
        %v1266 = vpop.f32.mrf.mxu0
        %v1267 = vadd.f32 0.0, %v1266
        %1268 = vmatmul.f32.gmra.mxu0 %v1229
        %v1269 = vpop.f32.mrf.mxu0
        %v1270 = vadd.f32 0.0, %v1269
        %1271 = vmatmul.f32.gmra.mxu0 %v1232
        %v1272 = vpop.f32.mrf.mxu0
        %v1273 = vadd.f32 0.0, %v1272
        %1274 = vdwg.mxu0
        %v1275 = vadd.f32 %v1091, %v704
        %v1276 = vadd.f32 %v1094, %v704
        %v1277 = vadd.f32 %v1097, %v704
        %v1278 = vadd.f32 %v1100, %v704
        %v1279 = vadd.f32 %v1103, %v704
        %v1280 = vadd.f32 %v1106, %v704
        %v1281 = vadd.f32 %v1109, %v704
        %v1282 = vadd.f32 %v1112, %v704
        %v1283 = vmul.f32 %v1187, 2.0
        %v1284 = vmul.f32 %v1190, 2.0
        %v1285 = vmul.f32 %v1193, 2.0
        %v1286 = vmul.f32 %v1196, 2.0
        %v1287 = vmul.f32 %v1199, 2.0
        %v1288 = vmul.f32 %v1202, 2.0
        %v1289 = vmul.f32 %v1205, 2.0
        %v1290 = vmul.f32 %v1208, 2.0
        %v1291 = vsub.f32 %v1275, %v1283
        %v1292 = vsub.f32 %v1276, %v1284
        %v1293 = vsub.f32 %v1277, %v1285
        %v1294 = vsub.f32 %v1278, %v1286
        %v1295 = vsub.f32 %v1279, %v1287
        %v1296 = vsub.f32 %v1280, %v1288
        %v1297 = vsub.f32 %v1281, %v1289
        %v1298 = vsub.f32 %v1282, %v1290
        %v1299 = vmax.f32 %v1291, 0.0
        %v1300 = vmax.f32 %v1292, 0.0
        %v1301 = vmax.f32 %v1293, 0.0
        %v1302 = vmax.f32 %v1294, 0.0
        %v1303 = vmax.f32 %v1295, 0.0
        %v1304 = vmax.f32 %v1296, 0.0
        %v1305 = vmax.f32 %v1297, 0.0
        %v1306 = vmax.f32 %v1298, 0.0
        %v1307 = vrsqrt.pop %v1299
        %v1308 = vmul.f32 %v1307, %v1299
        %v1309 = vmul.f32 %v1308, %v1307
        %v1310 = vmul.f32 0.5, %v1309
        %v1311 = vsub.f32 1.5, %v1310
        %v1312 = vmul.f32 %v1307, %v1311
        %v1313 = vmul.f32 %v1299, %v1312
        %vm1314 = vcmp.eq.f32.partialorder %v1299, inf
        %v1315 = vsel %vm1314, %v1299, %v1313
        %vm1316 = vcmp.eq.f32.partialorder %v1299, 0.0
        %v1317 = vand.u32 %v1299, 2147483648
        %v1318 = vsel %vm1316, %v1317, %v1315
        %v1319 = vrsqrt.pop %v1300
        %v1320 = vmul.f32 %v1319, %v1300
        %v1321 = vmul.f32 %v1320, %v1319
        %v1322 = vmul.f32 0.5, %v1321
        %v1323 = vsub.f32 1.5, %v1322
        %v1324 = vmul.f32 %v1319, %v1323
        %v1325 = vmul.f32 %v1300, %v1324
        %vm1326 = vcmp.eq.f32.partialorder %v1300, inf
        %v1327 = vsel %vm1326, %v1300, %v1325
        %vm1328 = vcmp.eq.f32.partialorder %v1300, 0.0
        %v1329 = vand.u32 %v1300, 2147483648
        %v1330 = vsel %vm1328, %v1329, %v1327
        %v1331 = vrsqrt.pop %v1301
        %v1332 = vmul.f32 %v1331, %v1301
        %v1333 = vmul.f32 %v1332, %v1331
        %v1334 = vmul.f32 0.5, %v1333
        %v1335 = vsub.f32 1.5, %v1334
        %v1336 = vmul.f32 %v1331, %v1335
        %v1337 = vmul.f32 %v1301, %v1336
        %vm1338 = vcmp.eq.f32.partialorder %v1301, inf
        %v1339 = vsel %vm1338, %v1301, %v1337
        %vm1340 = vcmp.eq.f32.partialorder %v1301, 0.0
        %v1341 = vand.u32 %v1301, 2147483648
        %v1342 = vsel %vm1340, %v1341, %v1339
        %v1343 = vrsqrt.pop %v1302
        %v1344 = vmul.f32 %v1343, %v1302
        %v1345 = vmul.f32 %v1344, %v1343
        %v1346 = vmul.f32 0.5, %v1345
        %v1347 = vsub.f32 1.5, %v1346
        %v1348 = vmul.f32 %v1343, %v1347
        %v1349 = vmul.f32 %v1302, %v1348
        %vm1350 = vcmp.eq.f32.partialorder %v1302, inf
        %v1351 = vsel %vm1350, %v1302, %v1349
        %vm1352 = vcmp.eq.f32.partialorder %v1302, 0.0
        %v1353 = vand.u32 %v1302, 2147483648
        %v1354 = vsel %vm1352, %v1353, %v1351
        %v1355 = vrsqrt.pop %v1303
        %v1356 = vmul.f32 %v1355, %v1303
        %v1357 = vmul.f32 %v1356, %v1355
        %v1358 = vmul.f32 0.5, %v1357
        %v1359 = vsub.f32 1.5, %v1358
        %v1360 = vmul.f32 %v1355, %v1359
        %v1361 = vmul.f32 %v1303, %v1360
        %vm1362 = vcmp.eq.f32.partialorder %v1303, inf
        %v1363 = vsel %vm1362, %v1303, %v1361
        %vm1364 = vcmp.eq.f32.partialorder %v1303, 0.0
        %v1365 = vand.u32 %v1303, 2147483648
        %v1366 = vsel %vm1364, %v1365, %v1363
        %v1367 = vrsqrt.pop %v1304
        %v1368 = vmul.f32 %v1367, %v1304
        %v1369 = vmul.f32 %v1368, %v1367
        %v1370 = vmul.f32 0.5, %v1369
        %v1371 = vsub.f32 1.5, %v1370
        %v1372 = vmul.f32 %v1367, %v1371
        %v1373 = vmul.f32 %v1304, %v1372
        %vm1374 = vcmp.eq.f32.partialorder %v1304, inf
        %v1375 = vsel %vm1374, %v1304, %v1373
        %vm1376 = vcmp.eq.f32.partialorder %v1304, 0.0
        %v1377 = vand.u32 %v1304, 2147483648
        %v1378 = vsel %vm1376, %v1377, %v1375
        %v1379 = vrsqrt.pop %v1305
        %v1380 = vmul.f32 %v1379, %v1305
        %v1381 = vmul.f32 %v1380, %v1379
        %v1382 = vmul.f32 0.5, %v1381
        %v1383 = vsub.f32 1.5, %v1382
        %v1384 = vmul.f32 %v1379, %v1383
        %v1385 = vmul.f32 %v1305, %v1384
        %vm1386 = vcmp.eq.f32.partialorder %v1305, inf
        %v1387 = vsel %vm1386, %v1305, %v1385
        %vm1388 = vcmp.eq.f32.partialorder %v1305, 0.0
        %v1389 = vand.u32 %v1305, 2147483648
        %v1390 = vsel %vm1388, %v1389, %v1387
        %v1391 = vrsqrt.pop %v1306
        %v1392 = vmul.f32 %v1391, %v1306
        %v1393 = vmul.f32 %v1392, %v1391
        %v1394 = vmul.f32 0.5, %v1393
        %v1395 = vsub.f32 1.5, %v1394
        %v1396 = vmul.f32 %v1391, %v1395
        %v1397 = vmul.f32 %v1306, %v1396
        %vm1398 = vcmp.eq.f32.partialorder %v1306, inf
        %v1399 = vsel %vm1398, %v1306, %v1397
        %vm1400 = vcmp.eq.f32.partialorder %v1306, 0.0
        %v1401 = vand.u32 %v1306, 2147483648
        %v1402 = vsel %vm1400, %v1401, %v1399
        %v1403 = vadd.f32 %v1123, %v711
        %v1404 = vadd.f32 %v1126, %v711
        %v1405 = vadd.f32 %v1129, %v711
        %v1406 = vadd.f32 %v1132, %v711
        %v1407 = vadd.f32 %v1135, %v711
        %v1408 = vadd.f32 %v1138, %v711
        %v1409 = vadd.f32 %v1141, %v711
        %v1410 = vadd.f32 %v1144, %v711
        %v1411 = vmul.f32 %v1252, 2.0
        %v1412 = vmul.f32 %v1255, 2.0
        %v1413 = vmul.f32 %v1258, 2.0
        %v1414 = vmul.f32 %v1261, 2.0
        %v1415 = vmul.f32 %v1264, 2.0
        %v1416 = vmul.f32 %v1267, 2.0
        %v1417 = vmul.f32 %v1270, 2.0
        %v1418 = vmul.f32 %v1273, 2.0
        %v1419 = vsub.f32 %v1403, %v1411
        %v1420 = vsub.f32 %v1404, %v1412
        %v1421 = vsub.f32 %v1405, %v1413
        %v1422 = vsub.f32 %v1406, %v1414
        %v1423 = vsub.f32 %v1407, %v1415
        %v1424 = vsub.f32 %v1408, %v1416
        %v1425 = vsub.f32 %v1409, %v1417
        %v1426 = vsub.f32 %v1410, %v1418
        %v1427 = vmax.f32 %v1419, 0.0
        %v1428 = vmax.f32 %v1420, 0.0
        %v1429 = vmax.f32 %v1421, 0.0
        %v1430 = vmax.f32 %v1422, 0.0
        %v1431 = vmax.f32 %v1423, 0.0
        %v1432 = vmax.f32 %v1424, 0.0
        %v1433 = vmax.f32 %v1425, 0.0
        %v1434 = vmax.f32 %v1426, 0.0
        %v1435 = vrsqrt.pop %v1427
        %v1436 = vmul.f32 %v1435, %v1427
        %v1437 = vmul.f32 %v1436, %v1435
        %v1438 = vmul.f32 0.5, %v1437
        %v1439 = vsub.f32 1.5, %v1438
        %v1440 = vmul.f32 %v1435, %v1439
        %v1441 = vmul.f32 %v1427, %v1440
        %vm1442 = vcmp.eq.f32.partialorder %v1427, inf
        %v1443 = vsel %vm1442, %v1427, %v1441
        %vm1444 = vcmp.eq.f32.partialorder %v1427, 0.0
        %v1445 = vand.u32 %v1427, 2147483648
        %v1446 = vsel %vm1444, %v1445, %v1443
        %v1447 = vrsqrt.pop %v1428
        %v1448 = vmul.f32 %v1447, %v1428
        %v1449 = vmul.f32 %v1448, %v1447
        %v1450 = vmul.f32 0.5, %v1449
        %v1451 = vsub.f32 1.5, %v1450
        %v1452 = vmul.f32 %v1447, %v1451
        %v1453 = vmul.f32 %v1428, %v1452
        %vm1454 = vcmp.eq.f32.partialorder %v1428, inf
        %v1455 = vsel %vm1454, %v1428, %v1453
        %vm1456 = vcmp.eq.f32.partialorder %v1428, 0.0
        %v1457 = vand.u32 %v1428, 2147483648
        %v1458 = vsel %vm1456, %v1457, %v1455
        %v1459 = vrsqrt.pop %v1429
        %v1460 = vmul.f32 %v1459, %v1429
        %v1461 = vmul.f32 %v1460, %v1459
        %v1462 = vmul.f32 0.5, %v1461
        %v1463 = vsub.f32 1.5, %v1462
        %v1464 = vmul.f32 %v1459, %v1463
        %v1465 = vmul.f32 %v1429, %v1464
        %vm1466 = vcmp.eq.f32.partialorder %v1429, inf
        %v1467 = vsel %vm1466, %v1429, %v1465
        %vm1468 = vcmp.eq.f32.partialorder %v1429, 0.0
        %v1469 = vand.u32 %v1429, 2147483648
        %v1470 = vsel %vm1468, %v1469, %v1467
        %v1471 = vrsqrt.pop %v1430
        %v1472 = vmul.f32 %v1471, %v1430
        %v1473 = vmul.f32 %v1472, %v1471
        %v1474 = vmul.f32 0.5, %v1473
        %v1475 = vsub.f32 1.5, %v1474
        %v1476 = vmul.f32 %v1471, %v1475
        %v1477 = vmul.f32 %v1430, %v1476
        %vm1478 = vcmp.eq.f32.partialorder %v1430, inf
        %v1479 = vsel %vm1478, %v1430, %v1477
        %vm1480 = vcmp.eq.f32.partialorder %v1430, 0.0
        %v1481 = vand.u32 %v1430, 2147483648
        %v1482 = vsel %vm1480, %v1481, %v1479
        %v1483 = vrsqrt.pop %v1431
        %v1484 = vmul.f32 %v1483, %v1431
        %v1485 = vmul.f32 %v1484, %v1483
        %v1486 = vmul.f32 0.5, %v1485
        %v1487 = vsub.f32 1.5, %v1486
        %v1488 = vmul.f32 %v1483, %v1487
        %v1489 = vmul.f32 %v1431, %v1488
        %vm1490 = vcmp.eq.f32.partialorder %v1431, inf
        %v1491 = vsel %vm1490, %v1431, %v1489
        %vm1492 = vcmp.eq.f32.partialorder %v1431, 0.0
        %v1493 = vand.u32 %v1431, 2147483648
        %v1494 = vsel %vm1492, %v1493, %v1491
        %v1495 = vrsqrt.pop %v1432
        %v1496 = vmul.f32 %v1495, %v1432
        %v1497 = vmul.f32 %v1496, %v1495
        %v1498 = vmul.f32 0.5, %v1497
        %v1499 = vsub.f32 1.5, %v1498
        %v1500 = vmul.f32 %v1495, %v1499
        %v1501 = vmul.f32 %v1432, %v1500
        %vm1502 = vcmp.eq.f32.partialorder %v1432, inf
        %v1503 = vsel %vm1502, %v1432, %v1501
        %vm1504 = vcmp.eq.f32.partialorder %v1432, 0.0
        %v1505 = vand.u32 %v1432, 2147483648
        %v1506 = vsel %vm1504, %v1505, %v1503
        %v1507 = vrsqrt.pop %v1433
        %v1508 = vmul.f32 %v1507, %v1433
        %v1509 = vmul.f32 %v1508, %v1507
        %v1510 = vmul.f32 0.5, %v1509
        %v1511 = vsub.f32 1.5, %v1510
        %v1512 = vmul.f32 %v1507, %v1511
        %v1513 = vmul.f32 %v1433, %v1512
        %vm1514 = vcmp.eq.f32.partialorder %v1433, inf
        %v1515 = vsel %vm1514, %v1433, %v1513
        %vm1516 = vcmp.eq.f32.partialorder %v1433, 0.0
        %v1517 = vand.u32 %v1433, 2147483648
        %v1518 = vsel %vm1516, %v1517, %v1515
        %v1519 = vrsqrt.pop %v1434
        %v1520 = vmul.f32 %v1519, %v1434
        %v1521 = vmul.f32 %v1520, %v1519
        %v1522 = vmul.f32 0.5, %v1521
        %v1523 = vsub.f32 1.5, %v1522
        %v1524 = vmul.f32 %v1519, %v1523
        %v1525 = vmul.f32 %v1434, %v1524
        %vm1526 = vcmp.eq.f32.partialorder %v1434, inf
        %v1527 = vsel %vm1526, %v1434, %v1525
        %vm1528 = vcmp.eq.f32.partialorder %v1434, 0.0
        %v1529 = vand.u32 %v1434, 2147483648
        %v1530 = vsel %vm1528, %v1529, %v1527
        %v1531 = vsub.f32 0.0, %v1318
        %v1532 = vsub.f32 0.0, %v1330
        %v1533 = vsub.f32 0.0, %v1342
        %v1534 = vsub.f32 0.0, %v1354
        %v1535 = vsub.f32 0.0, %v1366
        %v1536 = vsub.f32 0.0, %v1378
        %v1537 = vsub.f32 0.0, %v1390
        %v1538 = vsub.f32 0.0, %v1402
        %v1539 = vmul.f32 %v1531, 1.442695
        %v1540 = vpow.pop %v1539
        %v1541 = vmul.f32 %v1532, 1.442695
        %v1542 = vpow.pop %v1541
        %v1543 = vmul.f32 %v1533, 1.442695
        %v1544 = vpow.pop %v1543
        %v1545 = vmul.f32 %v1534, 1.442695
        %v1546 = vpow.pop %v1545
        %v1547 = vmul.f32 %v1535, 1.442695
        %v1548 = vpow.pop %v1547
        %v1549 = vmul.f32 %v1536, 1.442695
        %v1550 = vpow.pop %v1549
        %v1551 = vmul.f32 %v1537, 1.442695
        %v1552 = vpow.pop %v1551
        %v1553 = vmul.f32 %v1538, 1.442695
        %v1554 = vpow.pop %v1553
        %v1555 = vmul.f32 %v1446, %v1540
        %v1556 = vmul.f32 %v1458, %v1542
        %v1557 = vmul.f32 %v1470, %v1544
        %v1558 = vmul.f32 %v1482, %v1546
        %v1559 = vmul.f32 %v1494, %v1548
        %v1560 = vmul.f32 %v1506, %v1550
        %v1561 = vmul.f32 %v1518, %v1552
        %v1562 = vmul.f32 %v1530, %v1554
        %v1564 = vperm.slane %v1079, 0
        %1565 = vset.pattern.permute.xlu0 0
        %1566 = vperm.xlu0 %1565, %v1564
        %v1567 = vpop.permute.xlu0 %1566
        %vm1569 = vcmp.gt.f32.partialorder %v1555, %v1567
        %vm1570 = vcmp.gt.f32.partialorder %v1556, %v1567
        %vm1571 = vcmp.gt.f32.partialorder %v1557, %v1567
        %vm1572 = vcmp.gt.f32.partialorder %v1558, %v1567
        %vm1573 = vcmp.gt.f32.partialorder %v1559, %v1567
        %vm1574 = vcmp.gt.f32.partialorder %v1560, %v1567
        %vm1575 = vcmp.gt.f32.partialorder %v1561, %v1567
        %vm1576 = vcmp.gt.f32.partialorder %v1562, %v1567
        %v1577 = vsel %vm1569, 1, 0
        %v1578 = vsel %vm1570, 1, 0
        %v1579 = vsel %vm1571, 1, 0
        %v1580 = vsel %vm1572, 1, 0
        %v1581 = vsel %vm1573, 1, 0
        %v1582 = vsel %vm1574, 1, 0
        %v1583 = vsel %vm1575, 1, 0
        %v1584 = vsel %vm1576, 1, 0
        %v1585 = vcvt.s32.f32 %v1577
        %v1586 = vcvt.s32.f32 %v1578
        %v1587 = vcvt.s32.f32 %v1579
        %v1588 = vcvt.s32.f32 %v1580
        %v1589 = vcvt.s32.f32 %v1581
        %v1590 = vcvt.s32.f32 %v1582
        %v1591 = vcvt.s32.f32 %v1583
        %v1592 = vcvt.s32.f32 %v1584
        %v1593 = vmul.f32 %v1446, %v1585
        %v1594 = vmul.f32 %v1458, %v1586
        %v1595 = vmul.f32 %v1470, %v1587
        %v1596 = vmul.f32 %v1482, %v1588
        %v1597 = vmul.f32 %v1494, %v1589
        %v1598 = vmul.f32 %v1506, %v1590
        %v1599 = vmul.f32 %v1518, %v1591
        %v1600 = vmul.f32 %v1530, %v1592
        %v1601 = vadd.f32 %v1585, %v1586
        %v1602 = vadd.f32 %v1601, %v1587
        %v1603 = vadd.f32 %v1602, %v1588
        %v1604 = vadd.f32 %v1603, %v1589
        %v1605 = vadd.f32 %v1604, %v1590
        %v1606 = vadd.f32 %v1605, %v1591
        %v1607 = vadd.f32 %v1606, %v1592
        %v1608 = vrot.slane %v1607, 4
        %v1609 = vadd.f32 %v1607, %v1608
        %v1610 = vrot.slane %v1609, 2
        %v1611 = vadd.f32 %v1609, %v1610
        %v1612 = vrot.slane %v1611, 1
        %v1613 = vadd.f32 %v1611, %v1612
        %1614 = vxpose.xlu0.b32.start [1/16] %v690, 128
        %1615 = vxpose.xlu0.b32.cont [2/16] %v691, 128
        %1616 = vxpose.xlu0.b32.cont [3/16] %v692, 128
        %1617 = vxpose.xlu0.b32.cont [4/16] %v693, 128
        %1618 = vxpose.xlu0.b32.cont [5/16] %v694, 128
        %1619 = vxpose.xlu0.b32.cont [6/16] %v695, 128
        %1620 = vxpose.xlu0.b32.cont [7/16] %v696, 128
        %1621 = vxpose.xlu0.b32.cont [8/16] %v697, 128
        %1622 = vxpose.xlu0.b32.cont [9/16] 0.0, 128
        %1623 = vxpose.xlu0.b32.cont [10/16] 0.0, 128
        %1624 = vxpose.xlu0.b32.cont [11/16] 0.0, 128
        %1625 = vxpose.xlu0.b32.cont [12/16] 0.0, 128
        %1626 = vxpose.xlu0.b32.cont [13/16] 0.0, 128
        %1627 = vxpose.xlu0.b32.cont [14/16] 0.0, 128
        %1628 = vxpose.xlu0.b32.cont [15/16] 0.0, 128
        %1629 = vxpose.xlu0.b32.end [16/16] 0.0, 128
        %v1630 = vpop.trf.xlu0
        %v1631 = vpop.trf.xlu0
        %v1632 = vpop.trf.xlu0
        %v1633 = vpop.trf.xlu0
        %v1634 = vpop.trf.xlu0
        %v1635 = vpop.trf.xlu0
        %v1636 = vpop.trf.xlu0
        %v1637 = vpop.trf.xlu0
        %v1638 = vpop.trf.xlu0
        %v1639 = vpop.trf.xlu0
        %v1640 = vpop.trf.xlu0
        %v1641 = vpop.trf.xlu0
        %v1642 = vpop.trf.xlu0
        %v1643 = vpop.trf.xlu0
        %v1644 = vpop.trf.xlu0
        %v1645 = vpop.trf.xlu0
        %vm1646 = vcmask 523264
        %v1648 = vsel %vm1646, %v1630, 0
        %1650 = vmatpush.msra.mxu0 0.0
        %1651 = vmatpush.msra.mxu0 0.0
        %1652 = vmatpush.msra.mxu0 0.0
        %1653 = vmatpush.msra.mxu0 0.0
        %1654 = vmatpush.msra.mxu0 0.0
        %1655 = vmatpush.msra.mxu0 0.0
        %1656 = vmatpush.msra.mxu0 0.0
        %1657 = vmatpush.msra.mxu0 0.0
        %1658 = vmatpush.msra.mxu0 %v1592
        %1659 = vmatpush.msra.mxu0 %v1591
        %1660 = vmatpush.msra.mxu0 %v1590
        %1661 = vmatpush.msra.mxu0 %v1589
        %1662 = vmatpush.msra.mxu0 %v1588
        %1663 = vmatpush.msra.mxu0 %v1587
        %1664 = vmatpush.msra.mxu0 %v1586
        %1665 = vmatpush.msra.mxu0 %v1585
        %1666 = vmatmul.f32.gmra.mxu0 %v1648
        %v1667 = vpop.f32.mrf.mxu0
        %v1668 = vadd.f32 0.0, %v1667
        %1669 = vdwg.mxu0
        %v1670 = vld [vmem:[%s587] sm:$0xf]
        %v1671 = vld [vmem:[%s587 + $0x4] sm:$0xf]
        %v1672 = vld [vmem:[%s587 + $0x8] sm:$0xf]
        %v1673 = vld [vmem:[%s587 + $0xc] sm:$0xf]
        %v1674 = vld [vmem:[%s587 + $0x10] sm:$0xf]
        %v1675 = vld [vmem:[%s587 + $0x14] sm:$0xf]
        %v1676 = vld [vmem:[%s587 + $0x18] sm:$0xf]
        %v1677 = vld [vmem:[%s587 + $0x1c] sm:$0xf]
        %v1678 = vld [vmem:[%s587 + $0x20] sm:$0xf]
        %v1679 = vld [vmem:[%s587 + $0x24] sm:$0xf]
        %v1680 = vld [vmem:[%s587 + $0x28] sm:$0xf]
        %v1681 = vld [vmem:[%s587 + $0x2c] sm:$0xf]
        %v1682 = vld [vmem:[%s587 + $0x30] sm:$0xf]
        %v1683 = vld [vmem:[%s587 + $0x34] sm:$0xf]
        %v1684 = vld [vmem:[%s587 + $0x38] sm:$0xf]
        %v1685 = vld [vmem:[%s587 + $0x3c] sm:$0xf]
        %v1686 = vld [vmem:[%s587 + $0x40] sm:$0xf]
        %v1687 = vld [vmem:[%s587 + $0x44] sm:$0xf]
        %v1688 = vld [vmem:[%s587 + $0x48] sm:$0xf]
        %v1689 = vld [vmem:[%s587 + $0x4c] sm:$0xf]
        %v1690 = vld [vmem:[%s587 + $0x50] sm:$0xf]
        %v1691 = vld [vmem:[%s587 + $0x54] sm:$0xf]
        %v1692 = vld [vmem:[%s587 + $0x58] sm:$0xf]
        %v1693 = vld [vmem:[%s587 + $0x5c] sm:$0xf]
        %v1694 = vld [vmem:[%s587 + $0x60] sm:$0xf]
        %v1695 = vld [vmem:[%s587 + $0x64] sm:$0xf]
        %v1696 = vld [vmem:[%s587 + $0x68] sm:$0xf]
        %v1697 = vld [vmem:[%s587 + $0x6c] sm:$0xf]
        %v1698 = vld [vmem:[%s587 + $0x70] sm:$0xf]
        %v1699 = vld [vmem:[%s587 + $0x74] sm:$0xf]
        %v1700 = vld [vmem:[%s587 + $0x78] sm:$0xf]
        %v1701 = vld [vmem:[%s587 + $0x7c] sm:$0xf]
        %v1702 = vld [vmem:[%s587 + $0x80] sm:$0xf]
        %v1703 = vld [vmem:[%s587 + $0x84] sm:$0xf]
        %v1704 = vld [vmem:[%s587 + $0x88] sm:$0xf]
        %v1705 = vld [vmem:[%s587 + $0x8c] sm:$0xf]
        %v1706 = vld [vmem:[%s587 + $0x90] sm:$0xf]
        %v1707 = vld [vmem:[%s587 + $0x94] sm:$0xf]
        %v1708 = vld [vmem:[%s587 + $0x98] sm:$0xf]
        %v1709 = vld [vmem:[%s587 + $0x9c] sm:$0xf]
        %v1710 = vld [vmem:[%s587 + $0xa0] sm:$0xf]
        %v1711 = vld [vmem:[%s587 + $0xa4] sm:$0xf]
        %v1712 = vld [vmem:[%s587 + $0xa8] sm:$0xf]
        %v1713 = vld [vmem:[%s587 + $0xac] sm:$0xf]
        %v1714 = vld [vmem:[%s587 + $0xb0] sm:$0xf]
        %v1715 = vld [vmem:[%s587 + $0xb4] sm:$0xf]
        %v1716 = vld [vmem:[%s587 + $0xb8] sm:$0xf]
        %v1717 = vld [vmem:[%s587 + $0xbc] sm:$0xf]
        %v1718 = vld [vmem:[%s587 + $0xc0] sm:$0xf]
        %v1719 = vld [vmem:[%s587 + $0xc4] sm:$0xf]
        %v1720 = vld [vmem:[%s587 + $0xc8] sm:$0xf]
        %v1721 = vld [vmem:[%s587 + $0xcc] sm:$0xf]
        %v1722 = vld [vmem:[%s587 + $0xd0] sm:$0xf]
        %v1723 = vld [vmem:[%s587 + $0xd4] sm:$0xf]
        %v1724 = vld [vmem:[%s587 + $0xd8] sm:$0xf]
        %v1725 = vld [vmem:[%s587 + $0xdc] sm:$0xf]
        %v1726 = vld [vmem:[%s587 + $0xe0] sm:$0xf]
        %v1727 = vld [vmem:[%s587 + $0xe4] sm:$0xf]
        %v1728 = vld [vmem:[%s587 + $0xe8] sm:$0xf]
        %v1729 = vld [vmem:[%s587 + $0xec] sm:$0xf]
        %v1730 = vld [vmem:[%s587 + $0xf0] sm:$0xf]
        %v1731 = vld [vmem:[%s587 + $0xf4] sm:$0xf]
        %v1732 = vld [vmem:[%s587 + $0xf8] sm:$0xf]
        %v1733 = vld [vmem:[%s587 + $0xfc] sm:$0xf]
        %v1734 = vunpack.c.l.bf16 %v1670
        %v1735 = vunpack.c.l.bf16 %v1671
        %v1736 = vunpack.c.l.bf16 %v1672
        %v1737 = vunpack.c.l.bf16 %v1673
        %v1738 = vunpack.c.l.bf16 %v1674
        %v1739 = vunpack.c.l.bf16 %v1675
        %v1740 = vunpack.c.l.bf16 %v1676
        %v1741 = vunpack.c.l.bf16 %v1677
        %v1742 = vunpack.c.l.bf16 %v1678
        %v1743 = vunpack.c.l.bf16 %v1679
        %v1744 = vunpack.c.l.bf16 %v1680
        %v1745 = vunpack.c.l.bf16 %v1681
        %v1746 = vunpack.c.l.bf16 %v1682
        %v1747 = vunpack.c.l.bf16 %v1683
        %v1748 = vunpack.c.l.bf16 %v1684
        %v1749 = vunpack.c.l.bf16 %v1685
        %v1750 = vunpack.c.l.bf16 %v1686
        %v1751 = vunpack.c.l.bf16 %v1687
        %v1752 = vunpack.c.l.bf16 %v1688
        %v1753 = vunpack.c.l.bf16 %v1689
        %v1754 = vunpack.c.l.bf16 %v1690
        %v1755 = vunpack.c.l.bf16 %v1691
        %v1756 = vunpack.c.l.bf16 %v1692
        %v1757 = vunpack.c.l.bf16 %v1693
        %v1758 = vunpack.c.l.bf16 %v1694
        %v1759 = vunpack.c.l.bf16 %v1695
        %v1760 = vunpack.c.l.bf16 %v1696
        %v1761 = vunpack.c.l.bf16 %v1697
        %v1762 = vunpack.c.l.bf16 %v1698
        %v1763 = vunpack.c.l.bf16 %v1699
        %v1764 = vunpack.c.l.bf16 %v1700
        %v1765 = vunpack.c.l.bf16 %v1701
        %v1766 = vunpack.c.l.bf16 %v1702
        %v1767 = vunpack.c.l.bf16 %v1703
        %v1768 = vunpack.c.l.bf16 %v1704
        %v1769 = vunpack.c.l.bf16 %v1705
        %v1770 = vunpack.c.l.bf16 %v1706
        %v1771 = vunpack.c.l.bf16 %v1707
        %v1772 = vunpack.c.l.bf16 %v1708
        %v1773 = vunpack.c.l.bf16 %v1709
        %v1774 = vunpack.c.l.bf16 %v1710
        %v1775 = vunpack.c.l.bf16 %v1711
        %v1776 = vunpack.c.l.bf16 %v1712
        %v1777 = vunpack.c.l.bf16 %v1713
        %v1778 = vunpack.c.l.bf16 %v1714
        %v1779 = vunpack.c.l.bf16 %v1715
        %v1780 = vunpack.c.l.bf16 %v1716
        %v1781 = vunpack.c.l.bf16 %v1717
        %v1782 = vunpack.c.l.bf16 %v1718
        %v1783 = vunpack.c.l.bf16 %v1719
        %v1784 = vunpack.c.l.bf16 %v1720
        %v1785 = vunpack.c.l.bf16 %v1721
        %v1786 = vunpack.c.l.bf16 %v1722
        %v1787 = vunpack.c.l.bf16 %v1723
        %v1788 = vunpack.c.l.bf16 %v1724
        %v1789 = vunpack.c.l.bf16 %v1725
        %v1790 = vunpack.c.l.bf16 %v1726
        %v1791 = vunpack.c.l.bf16 %v1727
        %v1792 = vunpack.c.l.bf16 %v1728
        %v1793 = vunpack.c.l.bf16 %v1729
        %v1794 = vunpack.c.l.bf16 %v1730
        %v1795 = vunpack.c.l.bf16 %v1731
        %v1796 = vunpack.c.l.bf16 %v1732
        %v1797 = vunpack.c.l.bf16 %v1733
        %v1798 = vmul.f32 %v1734, %v1593
        %v1799 = vmul.f32 %v1735, %v1594
        %v1800 = vmul.f32 %v1736, %v1595
        %v1801 = vmul.f32 %v1737, %v1596
        %v1802 = vmul.f32 %v1738, %v1597
        %v1803 = vmul.f32 %v1739, %v1598
        %v1804 = vmul.f32 %v1740, %v1599
        %v1805 = vmul.f32 %v1741, %v1600
        %v1806 = vmul.f32 %v1742, %v1593
        %v1807 = vmul.f32 %v1743, %v1594
        %v1808 = vmul.f32 %v1744, %v1595
        %v1809 = vmul.f32 %v1745, %v1596
        %v1810 = vmul.f32 %v1746, %v1597
        %v1811 = vmul.f32 %v1747, %v1598
        %v1812 = vmul.f32 %v1748, %v1599
        %v1813 = vmul.f32 %v1749, %v1600
        %v1814 = vmul.f32 %v1750, %v1593
        %v1815 = vmul.f32 %v1751, %v1594
        %v1816 = vmul.f32 %v1752, %v1595
        %v1817 = vmul.f32 %v1753, %v1596
        %v1818 = vmul.f32 %v1754, %v1597
        %v1819 = vmul.f32 %v1755, %v1598
        %v1820 = vmul.f32 %v1756, %v1599
        %v1821 = vmul.f32 %v1757, %v1600
        %v1822 = vmul.f32 %v1758, %v1593
        %v1823 = vmul.f32 %v1759, %v1594
        %v1824 = vmul.f32 %v1760, %v1595
        %v1825 = vmul.f32 %v1761, %v1596
        %v1826 = vmul.f32 %v1762, %v1597
        %v1827 = vmul.f32 %v1763, %v1598
        %v1828 = vmul.f32 %v1764, %v1599
        %v1829 = vmul.f32 %v1765, %v1600
        %v1830 = vmul.f32 %v1766, %v1593
        %v1831 = vmul.f32 %v1767, %v1594
        %v1832 = vmul.f32 %v1768, %v1595
        %v1833 = vmul.f32 %v1769, %v1596
        %v1834 = vmul.f32 %v1770, %v1597
        %v1835 = vmul.f32 %v1771, %v1598
        %v1836 = vmul.f32 %v1772, %v1599
        %v1837 = vmul.f32 %v1773, %v1600
        %v1838 = vmul.f32 %v1774, %v1593
        %v1839 = vmul.f32 %v1775, %v1594
        %v1840 = vmul.f32 %v1776, %v1595
        %v1841 = vmul.f32 %v1777, %v1596
        %v1842 = vmul.f32 %v1778, %v1597
        %v1843 = vmul.f32 %v1779, %v1598
        %v1844 = vmul.f32 %v1780, %v1599
        %v1845 = vmul.f32 %v1781, %v1600
        %v1846 = vmul.f32 %v1782, %v1593
        %v1847 = vmul.f32 %v1783, %v1594
        %v1848 = vmul.f32 %v1784, %v1595
        %v1849 = vmul.f32 %v1785, %v1596
        %v1850 = vmul.f32 %v1786, %v1597
        %v1851 = vmul.f32 %v1787, %v1598
        %v1852 = vmul.f32 %v1788, %v1599
        %v1853 = vmul.f32 %v1789, %v1600
        %v1854 = vmul.f32 %v1790, %v1593
        %v1855 = vmul.f32 %v1791, %v1594
        %v1856 = vmul.f32 %v1792, %v1595
        %v1857 = vmul.f32 %v1793, %v1596
        %v1858 = vmul.f32 %v1794, %v1597
        %v1859 = vmul.f32 %v1795, %v1598
        %v1860 = vmul.f32 %v1796, %v1599
        %v1861 = vmul.f32 %v1797, %v1600
        %v1862 = vadd.f32 %v1798, %v1799
        %v1863 = vadd.f32 %v1862, %v1800
        %v1864 = vadd.f32 %v1863, %v1801
        %v1865 = vadd.f32 %v1864, %v1802
        %v1866 = vadd.f32 %v1865, %v1803
        %v1867 = vadd.f32 %v1866, %v1804
        %v1868 = vadd.f32 %v1867, %v1805
        %v1869 = vrot.slane %v1868, 4
        %v1870 = vadd.f32 %v1868, %v1869
        %v1871 = vrot.slane %v1870, 2
        %v1872 = vadd.f32 %v1870, %v1871
        %v1873 = vrot.slane %v1872, 1
        %v1874 = vadd.f32 %v1872, %v1873
        %v1875 = vadd.f32 %v1806, %v1807
        %v1876 = vadd.f32 %v1875, %v1808
        %v1877 = vadd.f32 %v1876, %v1809
        %v1878 = vadd.f32 %v1877, %v1810
        %v1879 = vadd.f32 %v1878, %v1811
        %v1880 = vadd.f32 %v1879, %v1812
        %v1881 = vadd.f32 %v1880, %v1813
        %v1882 = vrot.slane %v1881, 4
        %v1883 = vadd.f32 %v1881, %v1882
        %v1884 = vrot.slane %v1883, 2
        %v1885 = vadd.f32 %v1883, %v1884
        %v1886 = vrot.slane %v1885, 1
        %v1887 = vadd.f32 %v1885, %v1886
        %v1888 = vadd.f32 %v1814, %v1815
        %v1889 = vadd.f32 %v1888, %v1816
        %v1890 = vadd.f32 %v1889, %v1817
        %v1891 = vadd.f32 %v1890, %v1818
        %v1892 = vadd.f32 %v1891, %v1819
        %v1893 = vadd.f32 %v1892, %v1820
        %v1894 = vadd.f32 %v1893, %v1821
        %v1895 = vrot.slane %v1894, 4
        %v1896 = vadd.f32 %v1894, %v1895
        %v1897 = vrot.slane %v1896, 2
        %v1898 = vadd.f32 %v1896, %v1897
        %v1899 = vrot.slane %v1898, 1
        %v1900 = vadd.f32 %v1898, %v1899
        %v1901 = vadd.f32 %v1822, %v1823
        %v1902 = vadd.f32 %v1901, %v1824
        %v1903 = vadd.f32 %v1902, %v1825
        %v1904 = vadd.f32 %v1903, %v1826
        %v1905 = vadd.f32 %v1904, %v1827
        %v1906 = vadd.f32 %v1905, %v1828
        %v1907 = vadd.f32 %v1906, %v1829
        %v1908 = vrot.slane %v1907, 4
        %v1909 = vadd.f32 %v1907, %v1908
        %v1910 = vrot.slane %v1909, 2
        %v1911 = vadd.f32 %v1909, %v1910
        %v1912 = vrot.slane %v1911, 1
        %v1913 = vadd.f32 %v1911, %v1912
        %v1914 = vadd.f32 %v1830, %v1831
        %v1915 = vadd.f32 %v1914, %v1832
        %v1916 = vadd.f32 %v1915, %v1833
        %v1917 = vadd.f32 %v1916, %v1834
        %v1918 = vadd.f32 %v1917, %v1835
        %v1919 = vadd.f32 %v1918, %v1836
        %v1920 = vadd.f32 %v1919, %v1837
        %v1921 = vrot.slane %v1920, 4
        %v1922 = vadd.f32 %v1920, %v1921
        %v1923 = vrot.slane %v1922, 2
        %v1924 = vadd.f32 %v1922, %v1923
        %v1925 = vrot.slane %v1924, 1
        %v1926 = vadd.f32 %v1924, %v1925
        %v1927 = vadd.f32 %v1838, %v1839
        %v1928 = vadd.f32 %v1927, %v1840
        %v1929 = vadd.f32 %v1928, %v1841
        %v1930 = vadd.f32 %v1929, %v1842
        %v1931 = vadd.f32 %v1930, %v1843
        %v1932 = vadd.f32 %v1931, %v1844
        %v1933 = vadd.f32 %v1932, %v1845
        %v1934 = vrot.slane %v1933, 4
        %v1935 = vadd.f32 %v1933, %v1934
        %v1936 = vrot.slane %v1935, 2
        %v1937 = vadd.f32 %v1935, %v1936
        %v1938 = vrot.slane %v1937, 1
        %v1939 = vadd.f32 %v1937, %v1938
        %v1940 = vadd.f32 %v1846, %v1847
        %v1941 = vadd.f32 %v1940, %v1848
        %v1942 = vadd.f32 %v1941, %v1849
        %v1943 = vadd.f32 %v1942, %v1850
        %v1944 = vadd.f32 %v1943, %v1851
        %v1945 = vadd.f32 %v1944, %v1852
        %v1946 = vadd.f32 %v1945, %v1853
        %v1947 = vrot.slane %v1946, 4
        %v1948 = vadd.f32 %v1946, %v1947
        %v1949 = vrot.slane %v1948, 2
        %v1950 = vadd.f32 %v1948, %v1949
        %v1951 = vrot.slane %v1950, 1
        %v1952 = vadd.f32 %v1950, %v1951
        %v1953 = vadd.f32 %v1854, %v1855
        %v1954 = vadd.f32 %v1953, %v1856
        %v1955 = vadd.f32 %v1954, %v1857
        %v1956 = vadd.f32 %v1955, %v1858
        %v1957 = vadd.f32 %v1956, %v1859
        %v1958 = vadd.f32 %v1957, %v1860
        %v1959 = vadd.f32 %v1958, %v1861
        %v1960 = vrot.slane %v1959, 4
        %v1961 = vadd.f32 %v1959, %v1960
        %v1962 = vrot.slane %v1961, 2
        %v1963 = vadd.f32 %v1961, %v1962
        %v1964 = vrot.slane %v1963, 1
        %v1965 = vadd.f32 %v1963, %v1964
        %v1966 = vld [vmem:[#allocation2] sm:$0xff]
        %v1967 = vmul.f32 %v681, %v1613
        %v1968 = vsub.f32 %v1967, %v1668
        %v1969 = vmul.f32 %v1968, 0.5
        %vm1978 = vcmask 1041409
        %v1979 = vsel %vm1978, %v1887, %v1874
        %vm1980 = vcmask 1042434
        %v1981 = vsel %vm1980, %v1900, %v1979
        %vm1982 = vcmask 1043459
        %v1983 = vsel %vm1982, %v1913, %v1981
        %vm1984 = vcmask 1044484
        %v1985 = vsel %vm1984, %v1926, %v1983
        %vm1986 = vcmask 1045509
        %v1987 = vsel %vm1986, %v1939, %v1985
        %vm1988 = vcmask 1046534
        %v1989 = vsel %vm1988, %v1952, %v1987
        %vm1990 = vcmask 1047559
        %v1991 = vsel %vm1990, %v1965, %v1989
        %v1993 = vadd.f32 %v1969, %v1991
        %v1994 = vadd.f32 %v1966, %v1993
        %1995 = vst [vmem:[#allocation2] sm:$0xff] %v1994
        %p1996 = scmp.eq.s32.totalorder %s23, 1
        // Predicated region
        $region86: #{kinet_dsmc.1} parent=76 // pred_check
          %p1997 = pneg %p1996
        $region87: #{kinet_dsmc.1} parent=76 // pred_check_branch
          %1999 = sbr.rel (%p1997) target = $region89
        $region88: #{kinet_dsmc.1} parent=76 // pred_region
          %v2000 = vld [vmem:[#allocation2] sm:$0xff]
          %v2001 = vadd.f32 %v681, %v2000
          %2002 = vst [vmem:[%s679] sm:$0xff] %v2001
          %v2003 = vadd.f32 %v680, %v2001
          %2004 = vst [vmem:[%s675] sm:$0xff] %v2003
        $region89: #{kinet_dsmc.1} parent=76 // pred_fallthru
          _
        %p2005 = scmp.lt.s32.totalorder %s22, 1
        %s2006 = scalar_select %p2005, %s22, 1
        %s2007 = smul.addr %s2006, 8
        %s2008 = scalar_lea.vmem %s5, %s2007
        %p2009 = scmp.lt.s32.totalorder %s22, 1
        %s2010 = scalar_select %p2009, %s22, 1
        %s2011 = smul.addr %s2010, 8
        %s2012 = scalar_lea.vmem %s6, %s2011
        // Predicated region
        $region90: #{kinet_dsmc.1} parent=76 // pred_check
          %p2013 = pneg %p184
        $region91: #{kinet_dsmc.1} parent=76 // pred_check_branch
          %2015 = sbr.rel (%p2013) target = $region93
        $region92: #{kinet_dsmc.1} parent=76 // pred_region
          _
        $region93: #{kinet_dsmc.1} parent=76 // pred_fallthru
          _
        // Predicated region
        $region94: #{kinet_dsmc.1} parent=76 // pred_check
          %p2016 = pneg %p210
        $region95: #{kinet_dsmc.1} parent=76 // pred_check_branch
          %2018 = sbr.rel (%p2016) target = $region97
        $region96: #{kinet_dsmc.1} parent=76 // pred_region
          _
        $region97: #{kinet_dsmc.1} parent=76 // pred_fallthru
          _
      $region77: #{kinet_dsmc.1} parent=5 // pred_fallthru
        _
      %p2019 = scmp.le.s32.totalorder 2, %s13
      // Predicated region
      $region98: #{kinet_dsmc.1} parent=5 // pred_check
        %p2020 = pneg %p2019
      $region99: #{kinet_dsmc.1} parent=5 // pred_check_branch
        %2022 = sbr.rel (%p2020) target = $region101
      $region100: #{kinet_dsmc.1} parent=5 // pred_region
        %s2023 = ssub.s32 %s13, 2
        // Predicated region
        $region102: #{kinet_dsmc.1} parent=100 // pred_check
          %p2024 = pneg %p190
        $region103: #{kinet_dsmc.1} parent=100 // pred_check_branch
          %2026 = sbr.rel (%p2024) target = $region105
        $region104: #{kinet_dsmc.1} parent=100 // pred_region
          %p2027 = scmp.lt.s32.totalorder %s24, 1
          %s2028 = scalar_select %p2027, %s24, 1
          %s2029 = smul.addr %s2028, 8
          %s2030 = scalar_lea.vmem %s5, %s2029
        $region105: #{kinet_dsmc.1} parent=100 // pred_fallthru
          _
        // Predicated region
        $region106: #{kinet_dsmc.1} parent=100 // pred_check
          %p2031 = pneg %p216
        $region107: #{kinet_dsmc.1} parent=100 // pred_check_branch
          %2033 = sbr.rel (%p2031) target = $region109
        $region108: #{kinet_dsmc.1} parent=100 // pred_region
          %p2034 = scmp.lt.s32.totalorder %s24, 1
          %s2035 = scalar_select %p2034, %s24, 1
          %s2036 = smul.addr %s2035, 8
          %s2037 = scalar_lea.vmem %s6, %s2036
        $region109: #{kinet_dsmc.1} parent=100 // pred_fallthru
          _
      $region101: #{kinet_dsmc.1} parent=5 // pred_fallthru
        _
    $region6: #{kinet_dsmc.1} parent=1 // loop_footer
      %s17 = sadd.s32 1, %s13
    $region7: #{kinet_dsmc.1} parent=1 // loop_footer_branch
      %12 = sbr.rel target = $region3
    $region8: #{kinet_dsmc.1} parent=1 // loop_exit
      _

</llo_original>
